<compile_context>
chip_gen: v7x
topology: tpu7x:2x2x1
jax: 0.10.0
libtpu: 0.0.40
codegen_flags: <defaults>
</compile_context>

<pallas_src>
import math

import jax
import jax.numpy as jnp
from jax.experimental import pallas as pl
from jax.experimental.pallas import tpu as pltpu

# ---- small BERT-like config ----
BATCH = 2
SEQ = 8
HIDDEN = 32
NUM_HEADS = 4
HEAD_DIM = HIDDEN // NUM_HEADS
LN_EPS = 1e-12

BS = BATCH * SEQ            # flattened (batch * seq) rows = 16
NEG_BIG = -1e30             # cross-batch block mask (underflows to exactly 0 after exp)


def bert_attention_kernel(x_ref, mask_ref, w_ref, v_ref, out_ref):
    """Fused: QKV proj -> per-head attention -> output proj -> residual -> LayerNorm.

    x_ref:    (BS, H)      flattened hidden states
    mask_ref: (BS, BS)     additive attention mask (incl. cross-batch blocking)
    w_ref:    (H, 4H)      [Wq | Wk | Wv | Wo]
    v_ref:    (3, 4H)      [[bq|bk|bv|bo], [ln_w | 0], [ln_b | 0]]
    out_ref:  (BS, H)
    """
    x = x_ref[...]
    mask = mask_ref[...]
    w = w_ref[...]
    vecs = v_ref[...]

    w_qkv = w[:, :3 * HIDDEN]             # (H, 3H)
    w_o = w[:, 3 * HIDDEN:]               # (H, H)
    b_qkv = vecs[0:1, :3 * HIDDEN]        # (1, 3H)
    b_o = vecs[0:1, 3 * HIDDEN:]          # (1, H)
    ln_w = vecs[1:2, :HIDDEN]             # (1, H)
    ln_b = vecs[2:3, :HIDDEN]             # (1, H)

    # --- fused Q/K/V projection: one (BS,H) @ (H,3H) matmul ---
    qkv = jnp.dot(x, w_qkv, preferred_element_type=jnp.float32) + b_qkv   # (BS, 3H)

    scale = 1.0 / math.sqrt(HEAD_DIM)
    attn = None
    for h in range(NUM_HEADS):            # small static unroll (NUM_HEADS = 4)
        lo, hi = h * HEAD_DIM, (h + 1) * HEAD_DIM
        qh = qkv[:, lo:hi]                                  # (BS, D)
        kh = qkv[:, HIDDEN + lo:HIDDEN + hi]                # (BS, D)
        vh = qkv[:, 2 * HIDDEN + lo:2 * HIDDEN + hi]        # (BS, D)

        # scores = (q @ k^T) / sqrt(d) + mask  -- contraction on last dims,
        # no explicit transpose relayout needed.
        s = jax.lax.dot_general(
            qh, kh, (((1,), (1,)), ((), ())),
            preferred_element_type=jnp.float32) * scale + mask            # (BS, BS)
        s = s - jnp.max(s, axis=-1, keepdims=True)
        p = jnp.exp(s)
        p = p * pl.reciprocal(jnp.sum(p, axis=-1, keepdims=True), approx=True)
        # (attention-probs dropout is identity in eval mode)
        ctx_h = jnp.dot(p, vh, preferred_element_type=jnp.float32)        # (BS, D)

        # Fold each head straight into the output projection:
        #   concat_h(ctx_h) @ Wo == sum_h ctx_h @ Wo[h*D:(h+1)*D, :]
        part = jnp.dot(ctx_h, w_o[lo:hi, :], preferred_element_type=jnp.float32)
        attn = part if attn is None else attn + part

    attn = attn + b_o                     # BertSelfOutput dense bias
    # (hidden-states dropout is identity in eval mode)

    # --- residual + LayerNorm (TF style, eps inside sqrt) ---
    y = attn + x
    u = jnp.mean(y, axis=-1, keepdims=True)
    d = y - u
    var = jnp.mean(d * d, axis=-1, keepdims=True)
    out_ref[...] = ln_w * (d * jax.lax.rsqrt(var + LN_EPS)) + ln_b


def bert_attention_forward(x, attn_mask, params):
    """x: (B, S, H) float32; attn_mask: (B, 1, S) additive mask (0 / -10000)."""
    (wq, bq, wk, bk, wv, bv, wo, bo, ln_w, ln_b) = params
    B, S, H = x.shape
    bs = B * S

    # --- pack parameters into 2 lane-dense slabs (few wide DMAs instead of 16 tiny ones)
    w_all = jnp.concatenate([wq, wk, wv, wo], axis=1)                 # (H, 4H) = (32, 128)
    bias_row = jnp.concatenate([bq, bk, bv, bo], axis=0)[None, :]     # (1, 4H)
    pad = jnp.zeros((3 * H,), jnp.float32)
    lnw_row = jnp.concatenate([ln_w, pad], axis=0)[None, :]           # (1, 4H)
    lnb_row = jnp.concatenate([ln_b, pad], axis=0)[None, :]           # (1, 4H)
    v_all = jnp.concatenate([bias_row, lnw_row, lnb_row], axis=0)     # (3, 4H)

    # --- flatten batch*seq; build a (BS, BS) additive mask that (a) carries the
    # per-batch key mask and (b) blocks cross-batch attention exactly (-1e30 -> exp==0)
    x2d = x.reshape(bs, H)
    key_mask = attn_mask[:, 0, :]                                     # (B, S)
    same_batch = jnp.eye(B, dtype=bool)[:, None, :, None]             # (B,1,B,1)
    full = jnp.where(same_batch, key_mask[None, None, :, :], NEG_BIG) # (B,1,B,S)
    mask2d = jnp.broadcast_to(full, (B, S, B, S)).reshape(bs, bs)     # (BS, BS)

    out2d = pl.pallas_call(
        bert_attention_kernel,
        out_shape=jax.ShapeDtypeStruct((bs, H), jnp.float32),
        grid=(1,),                                   # single invocation, no per-batch steps
        in_specs=[
            pl.BlockSpec((bs, H), lambda i: (0, 0)),         # x (flattened)
            pl.BlockSpec((bs, bs), lambda i: (0, 0)),        # full additive mask
            pl.BlockSpec((H, 4 * H), lambda i: (0, 0)),      # packed weights (32,128)
            pl.BlockSpec((3, 4 * H), lambda i: (0, 0)),      # packed biases/LN params
        ],
        out_specs=pl.BlockSpec((bs, H), lambda i: (0, 0)),
        compiler_params=pltpu.CompilerParams(
            dimension_semantics=("arbitrary",)),
        # TODO(synk): at real BERT sizes (H=768+, S=512) tile over seq/hidden, raise
        # vmem_limit_bytes, feed bf16 into the MXU, and restore a >=2-way parallel grid
        # axis so both v7x TensorCores are used.
    )(x2d, mask2d, w_all, v_all)

    return out2d.reshape(B, S, H)


def init_params(key):
    std = 0.02
    ks = jax.random.split(key, 8)
    wq = jax.random.normal(ks[0], (HIDDEN, HIDDEN), jnp.float32) * std
    wk = jax.random.normal(ks[1], (HIDDEN, HIDDEN), jnp.float32) * std
    wv = jax.random.normal(ks[2], (HIDDEN, HIDDEN), jnp.float32) * std
    wo = jax.random.normal(ks[3], (HIDDEN, HIDDEN), jnp.float32) * std
    bq = jax.random.normal(ks[4], (HIDDEN,), jnp.float32) * std
    bk = jax.random.normal(ks[5], (HIDDEN,), jnp.float32) * std
    bv = jax.random.normal(ks[6], (HIDDEN,), jnp.float32) * std
    bo = jax.random.normal(ks[7], (HIDDEN,), jnp.float32) * std
    ln_w = jnp.ones((HIDDEN,), jnp.float32)
    ln_b = jnp.zeros((HIDDEN,), jnp.float32)
    return (wq, bq, wk, bk, wv, bv, wo, bo, ln_w, ln_b)


if __name__ == "__main__":
    key = jax.random.PRNGKey(0)
    k_x, k_p = jax.random.split(key)

    x = jax.random.normal(k_x, (BATCH, SEQ, HIDDEN), jnp.float32)

    # BERT-style additive mask: 0 for valid tokens, -10000 for padding.
    valid_lens = jnp.array([SEQ, SEQ - 3], dtype=jnp.int32)
    pos = jnp.arange(SEQ)[None, :]
    attn_mask = jnp.where(pos < valid_lens[:, None], 0.0, -10000.0).astype(jnp.float32)
    attn_mask = attn_mask.reshape(BATCH, 1, SEQ)

    params = init_params(k_p)

    out = bert_attention_forward(x, attn_mask, params)
    out = jax.block_until_ready(out)
    assert out.shape == (BATCH, SEQ, HIDDEN)
    print("KERNEL_OK")
</pallas_src>

<mosaic_0001>
module attributes {stable_mosaic.version = 11 : i64} {
  func.func @bert_attention_kernel(%arg0: i32, %arg1: memref<16x32xf32, #tpu.memory_space<vmem>>, %arg2: memref<16x16xf32, #tpu.memory_space<vmem>>, %arg3: memref<32x128xf32, #tpu.memory_space<vmem>>, %arg4: memref<3x128xf32, #tpu.memory_space<vmem>>, %arg5: memref<16x32xf32, #tpu.memory_space<vmem>>) attributes {dimension_semantics = [#tpu.dimension_semantics<arbitrary>], iteration_bounds = array<i64: 1>, scalar_prefetch = 0 : i64, scratch_operands = 0 : i64, tpu.core_type = #tpu.core_type<tc>, window_params = [{pipeline_mode = #tpu.pipeline_mode<synchronous>, transform_indices = @transform_0, window_bounds = array<i64: 16, 32>}, {pipeline_mode = #tpu.pipeline_mode<synchronous>, transform_indices = @transform_1, window_bounds = array<i64: 16, 16>}, {pipeline_mode = #tpu.pipeline_mode<synchronous>, transform_indices = @transform_2, window_bounds = array<i64: 32, 128>}, {pipeline_mode = #tpu.pipeline_mode<synchronous>, transform_indices = @transform_3, window_bounds = array<i64: 3, 128>}, {pipeline_mode = #tpu.pipeline_mode<synchronous>, transform_indices = @transform_4, window_bounds = array<i64: 16, 32>}]} {
    %c0 = arith.constant 0 : index
    %c0_0 = arith.constant 0 : index
    %0 = vector.load %arg1[%c0, %c0_0] : memref<16x32xf32, #tpu.memory_space<vmem>>, vector<16x32xf32>
    %c0_1 = arith.constant 0 : index
    %c0_2 = arith.constant 0 : index
    %1 = vector.load %arg2[%c0_1, %c0_2] : memref<16x16xf32, #tpu.memory_space<vmem>>, vector<16x16xf32>
    %c0_3 = arith.constant 0 : index
    %c0_4 = arith.constant 0 : index
    %2 = vector.load %arg3[%c0_3, %c0_4] : memref<32x128xf32, #tpu.memory_space<vmem>>, vector<32x128xf32>
    %c0_5 = arith.constant 0 : index
    %c0_6 = arith.constant 0 : index
    %3 = vector.load %arg4[%c0_5, %c0_6] : memref<3x128xf32, #tpu.memory_space<vmem>>, vector<3x128xf32>
    %4 = vector.extract_strided_slice %2 {offsets = [0, 0], sizes = [32, 96], strides = [1, 1]} : vector<32x128xf32> to vector<32x96xf32>
    %5 = vector.extract_strided_slice %2 {offsets = [0, 96], sizes = [32, 32], strides = [1, 1]} : vector<32x128xf32> to vector<32x32xf32>
    %6 = vector.extract_strided_slice %3 {offsets = [0, 0], sizes = [1, 96], strides = [1, 1]} : vector<3x128xf32> to vector<1x96xf32>
    %7 = vector.extract_strided_slice %3 {offsets = [0, 96], sizes = [1, 32], strides = [1, 1]} : vector<3x128xf32> to vector<1x32xf32>
    %8 = vector.extract_strided_slice %3 {offsets = [1, 0], sizes = [1, 32], strides = [1, 1]} : vector<3x128xf32> to vector<1x32xf32>
    %9 = vector.extract_strided_slice %3 {offsets = [2, 0], sizes = [1, 32], strides = [1, 1]} : vector<3x128xf32> to vector<1x32xf32>
    %cst = arith.constant dense<0.000000e+00> : vector<16x96xf32>
    %10 = tpu.matmul %0, %4, %cst {dimension_numbers = #tpu.dot_dimension_numbers<[1], [0], [0], [1], [0, 0, 1, 1], [], []>} : vector<16x32xf32>, vector<32x96xf32>, vector<16x96xf32> -> vector<16x96xf32>
    %11 = vector.broadcast %6 : vector<1x96xf32> to vector<16x96xf32>
    %12 = arith.addf %10, %11 : vector<16x96xf32>
    %13 = vector.extract_strided_slice %12 {offsets = [0, 0], sizes = [16, 8], strides = [1, 1]} : vector<16x96xf32> to vector<16x8xf32>
    %14 = vector.extract_strided_slice %12 {offsets = [0, 32], sizes = [16, 8], strides = [1, 1]} : vector<16x96xf32> to vector<16x8xf32>
    %15 = vector.extract_strided_slice %12 {offsets = [0, 64], sizes = [16, 8], strides = [1, 1]} : vector<16x96xf32> to vector<16x8xf32>
    %cst_7 = arith.constant dense<0.000000e+00> : vector<16x16xf32>
    %16 = tpu.matmul %13, %14, %cst_7 {dimension_numbers = #tpu.dot_dimension_numbers<[1], [1], [0], [0], [0, 0, 1, 0], [], []>} : vector<16x8xf32>, vector<16x8xf32>, vector<16x16xf32> -> vector<16x16xf32>
    %cst_8 = arith.constant 0.353553385 : f32
    %17 = vector.broadcast %cst_8 : f32 to vector<16x16xf32>
    %18 = arith.mulf %16, %17 : vector<16x16xf32>
    %19 = arith.addf %18, %1 : vector<16x16xf32>
    %cst_9 = arith.constant dense<0xFF800000> : vector<16xf32>
    %20 = vector.multi_reduction <maximumf>, %19, %cst_9 [1] : vector<16x16xf32> to vector<16xf32>
    %21 = vector.shape_cast %20 : vector<16xf32> to vector<16x1xf32>
    %22 = vector.broadcast %21 : vector<16x1xf32> to vector<16x16xf32>
    %23 = arith.subf %19, %22 : vector<16x16xf32>
    %24 = math.exp %23 : vector<16x16xf32>
    %cst_10 = arith.constant dense<0.000000e+00> : vector<16xf32>
    %25 = vector.multi_reduction <add>, %24, %cst_10 [1] : vector<16x16xf32> to vector<16xf32>
    %26 = vector.shape_cast %25 : vector<16xf32> to vector<16x1xf32>
    %27 = tpu.reciprocal %26 {approx = true} : vector<16x1xf32> -> vector<16x1xf32>
    %28 = vector.broadcast %27 : vector<16x1xf32> to vector<16x16xf32>
    %29 = arith.mulf %24, %28 : vector<16x16xf32>
    %cst_11 = arith.constant dense<0.000000e+00> : vector<16x8xf32>
    %30 = tpu.matmul %29, %15, %cst_11 {dimension_numbers = #tpu.dot_dimension_numbers<[1], [0], [0], [1], [0, 0, 1, 1], [], []>} : vector<16x16xf32>, vector<16x8xf32>, vector<16x8xf32> -> vector<16x8xf32>
    %31 = vector.extract_strided_slice %5 {offsets = [0, 0], sizes = [8, 32], strides = [1, 1]} : vector<32x32xf32> to vector<8x32xf32>
    %cst_12 = arith.constant dense<0.000000e+00> : vector<16x32xf32>
    %32 = tpu.matmul %30, %31, %cst_12 {dimension_numbers = #tpu.dot_dimension_numbers<[1], [0], [0], [1], [0, 0, 1, 1], [], []>} : vector<16x8xf32>, vector<8x32xf32>, vector<16x32xf32> -> vector<16x32xf32>
    %33 = vector.extract_strided_slice %12 {offsets = [0, 8], sizes = [16, 8], strides = [1, 1]} : vector<16x96xf32> to vector<16x8xf32>
    %34 = vector.extract_strided_slice %12 {offsets = [0, 40], sizes = [16, 8], strides = [1, 1]} : vector<16x96xf32> to vector<16x8xf32>
    %35 = vector.extract_strided_slice %12 {offsets = [0, 72], sizes = [16, 8], strides = [1, 1]} : vector<16x96xf32> to vector<16x8xf32>
    %cst_13 = arith.constant dense<0.000000e+00> : vector<16x16xf32>
    %36 = tpu.matmul %33, %34, %cst_13 {dimension_numbers = #tpu.dot_dimension_numbers<[1], [1], [0], [0], [0, 0, 1, 0], [], []>} : vector<16x8xf32>, vector<16x8xf32>, vector<16x16xf32> -> vector<16x16xf32>
    %cst_14 = arith.constant 0.353553385 : f32
    %37 = vector.broadcast %cst_14 : f32 to vector<16x16xf32>
    %38 = arith.mulf %36, %37 : vector<16x16xf32>
    %39 = arith.addf %38, %1 : vector<16x16xf32>
    %cst_15 = arith.constant dense<0xFF800000> : vector<16xf32>
    %40 = vector.multi_reduction <maximumf>, %39, %cst_15 [1] : vector<16x16xf32> to vector<16xf32>
    %41 = vector.shape_cast %40 : vector<16xf32> to vector<16x1xf32>
    %42 = vector.broadcast %41 : vector<16x1xf32> to vector<16x16xf32>
    %43 = arith.subf %39, %42 : vector<16x16xf32>
    %44 = math.exp %43 : vector<16x16xf32>
    %cst_16 = arith.constant dense<0.000000e+00> : vector<16xf32>
    %45 = vector.multi_reduction <add>, %44, %cst_16 [1] : vector<16x16xf32> to vector<16xf32>
    %46 = vector.shape_cast %45 : vector<16xf32> to vector<16x1xf32>
    %47 = tpu.reciprocal %46 {approx = true} : vector<16x1xf32> -> vector<16x1xf32>
    %48 = vector.broadcast %47 : vector<16x1xf32> to vector<16x16xf32>
    %49 = arith.mulf %44, %48 : vector<16x16xf32>
    %cst_17 = arith.constant dense<0.000000e+00> : vector<16x8xf32>
    %50 = tpu.matmul %49, %35, %cst_17 {dimension_numbers = #tpu.dot_dimension_numbers<[1], [0], [0], [1], [0, 0, 1, 1], [], []>} : vector<16x16xf32>, vector<16x8xf32>, vector<16x8xf32> -> vector<16x8xf32>
    %51 = vector.extract_strided_slice %5 {offsets = [8, 0], sizes = [8, 32], strides = [1, 1]} : vector<32x32xf32> to vector<8x32xf32>
    %cst_18 = arith.constant dense<0.000000e+00> : vector<16x32xf32>
    %52 = tpu.matmul %50, %51, %cst_18 {dimension_numbers = #tpu.dot_dimension_numbers<[1], [0], [0], [1], [0, 0, 1, 1], [], []>} : vector<16x8xf32>, vector<8x32xf32>, vector<16x32xf32> -> vector<16x32xf32>
    %53 = arith.addf %32, %52 : vector<16x32xf32>
    %54 = vector.extract_strided_slice %12 {offsets = [0, 16], sizes = [16, 8], strides = [1, 1]} : vector<16x96xf32> to vector<16x8xf32>
    %55 = vector.extract_strided_slice %12 {offsets = [0, 48], sizes = [16, 8], strides = [1, 1]} : vector<16x96xf32> to vector<16x8xf32>
    %56 = vector.extract_strided_slice %12 {offsets = [0, 80], sizes = [16, 8], strides = [1, 1]} : vector<16x96xf32> to vector<16x8xf32>
    %cst_19 = arith.constant dense<0.000000e+00> : vector<16x16xf32>
    %57 = tpu.matmul %54, %55, %cst_19 {dimension_numbers = #tpu.dot_dimension_numbers<[1], [1], [0], [0], [0, 0, 1, 0], [], []>} : vector<16x8xf32>, vector<16x8xf32>, vector<16x16xf32> -> vector<16x16xf32>
    %cst_20 = arith.constant 0.353553385 : f32
    %58 = vector.broadcast %cst_20 : f32 to vector<16x16xf32>
    %59 = arith.mulf %57, %58 : vector<16x16xf32>
    %60 = arith.addf %59, %1 : vector<16x16xf32>
    %cst_21 = arith.constant dense<0xFF800000> : vector<16xf32>
    %61 = vector.multi_reduction <maximumf>, %60, %cst_21 [1] : vector<16x16xf32> to vector<16xf32>
    %62 = vector.shape_cast %61 : vector<16xf32> to vector<16x1xf32>
    %63 = vector.broadcast %62 : vector<16x1xf32> to vector<16x16xf32>
    %64 = arith.subf %60, %63 : vector<16x16xf32>
    %65 = math.exp %64 : vector<16x16xf32>
    %cst_22 = arith.constant dense<0.000000e+00> : vector<16xf32>
    %66 = vector.multi_reduction <add>, %65, %cst_22 [1] : vector<16x16xf32> to vector<16xf32>
    %67 = vector.shape_cast %66 : vector<16xf32> to vector<16x1xf32>
    %68 = tpu.reciprocal %67 {approx = true} : vector<16x1xf32> -> vector<16x1xf32>
    %69 = vector.broadcast %68 : vector<16x1xf32> to vector<16x16xf32>
    %70 = arith.mulf %65, %69 : vector<16x16xf32>
    %cst_23 = arith.constant dense<0.000000e+00> : vector<16x8xf32>
    %71 = tpu.matmul %70, %56, %cst_23 {dimension_numbers = #tpu.dot_dimension_numbers<[1], [0], [0], [1], [0, 0, 1, 1], [], []>} : vector<16x16xf32>, vector<16x8xf32>, vector<16x8xf32> -> vector<16x8xf32>
    %72 = vector.extract_strided_slice %5 {offsets = [16, 0], sizes = [8, 32], strides = [1, 1]} : vector<32x32xf32> to vector<8x32xf32>
    %cst_24 = arith.constant dense<0.000000e+00> : vector<16x32xf32>
    %73 = tpu.matmul %71, %72, %cst_24 {dimension_numbers = #tpu.dot_dimension_numbers<[1], [0], [0], [1], [0, 0, 1, 1], [], []>} : vector<16x8xf32>, vector<8x32xf32>, vector<16x32xf32> -> vector<16x32xf32>
    %74 = arith.addf %53, %73 : vector<16x32xf32>
    %75 = vector.extract_strided_slice %12 {offsets = [0, 24], sizes = [16, 8], strides = [1, 1]} : vector<16x96xf32> to vector<16x8xf32>
    %76 = vector.extract_strided_slice %12 {offsets = [0, 56], sizes = [16, 8], strides = [1, 1]} : vector<16x96xf32> to vector<16x8xf32>
    %77 = vector.extract_strided_slice %12 {offsets = [0, 88], sizes = [16, 8], strides = [1, 1]} : vector<16x96xf32> to vector<16x8xf32>
    %cst_25 = arith.constant dense<0.000000e+00> : vector<16x16xf32>
    %78 = tpu.matmul %75, %76, %cst_25 {dimension_numbers = #tpu.dot_dimension_numbers<[1], [1], [0], [0], [0, 0, 1, 0], [], []>} : vector<16x8xf32>, vector<16x8xf32>, vector<16x16xf32> -> vector<16x16xf32>
    %cst_26 = arith.constant 0.353553385 : f32
    %79 = vector.broadcast %cst_26 : f32 to vector<16x16xf32>
    %80 = arith.mulf %78, %79 : vector<16x16xf32>
    %81 = arith.addf %80, %1 : vector<16x16xf32>
    %cst_27 = arith.constant dense<0xFF800000> : vector<16xf32>
    %82 = vector.multi_reduction <maximumf>, %81, %cst_27 [1] : vector<16x16xf32> to vector<16xf32>
    %83 = vector.shape_cast %82 : vector<16xf32> to vector<16x1xf32>
    %84 = vector.broadcast %83 : vector<16x1xf32> to vector<16x16xf32>
    %85 = arith.subf %81, %84 : vector<16x16xf32>
    %86 = math.exp %85 : vector<16x16xf32>
    %cst_28 = arith.constant dense<0.000000e+00> : vector<16xf32>
    %87 = vector.multi_reduction <add>, %86, %cst_28 [1] : vector<16x16xf32> to vector<16xf32>
    %88 = vector.shape_cast %87 : vector<16xf32> to vector<16x1xf32>
    %89 = tpu.reciprocal %88 {approx = true} : vector<16x1xf32> -> vector<16x1xf32>
    %90 = vector.broadcast %89 : vector<16x1xf32> to vector<16x16xf32>
    %91 = arith.mulf %86, %90 : vector<16x16xf32>
    %cst_29 = arith.constant dense<0.000000e+00> : vector<16x8xf32>
    %92 = tpu.matmul %91, %77, %cst_29 {dimension_numbers = #tpu.dot_dimension_numbers<[1], [0], [0], [1], [0, 0, 1, 1], [], []>} : vector<16x16xf32>, vector<16x8xf32>, vector<16x8xf32> -> vector<16x8xf32>
    %93 = vector.extract_strided_slice %5 {offsets = [24, 0], sizes = [8, 32], strides = [1, 1]} : vector<32x32xf32> to vector<8x32xf32>
    %cst_30 = arith.constant dense<0.000000e+00> : vector<16x32xf32>
    %94 = tpu.matmul %92, %93, %cst_30 {dimension_numbers = #tpu.dot_dimension_numbers<[1], [0], [0], [1], [0, 0, 1, 1], [], []>} : vector<16x8xf32>, vector<8x32xf32>, vector<16x32xf32> -> vector<16x32xf32>
    %95 = arith.addf %74, %94 : vector<16x32xf32>
    %96 = vector.broadcast %7 : vector<1x32xf32> to vector<16x32xf32>
    %97 = arith.addf %95, %96 : vector<16x32xf32>
    %98 = arith.addf %97, %0 : vector<16x32xf32>
    %cst_31 = arith.constant dense<0.000000e+00> : vector<16xf32>
    %99 = vector.multi_reduction <add>, %98, %cst_31 [1] : vector<16x32xf32> to vector<16xf32>
    %100 = vector.shape_cast %99 : vector<16xf32> to vector<16x1xf32>
    %cst_32 = arith.constant 3.200000e+01 : f32
    %101 = vector.broadcast %cst_32 : f32 to vector<16x1xf32>
    %102 = arith.divf %100, %101 : vector<16x1xf32>
    %103 = vector.broadcast %102 : vector<16x1xf32> to vector<16x32xf32>
    %104 = arith.subf %98, %103 : vector<16x32xf32>
    %105 = arith.mulf %104, %104 : vector<16x32xf32>
    %cst_33 = arith.constant dense<0.000000e+00> : vector<16xf32>
    %106 = vector.multi_reduction <add>, %105, %cst_33 [1] : vector<16x32xf32> to vector<16xf32>
    %107 = vector.shape_cast %106 : vector<16xf32> to vector<16x1xf32>
    %cst_34 = arith.constant 3.200000e+01 : f32
    %108 = vector.broadcast %cst_34 : f32 to vector<16x1xf32>
    %109 = arith.divf %107, %108 : vector<16x1xf32>
    %cst_35 = arith.constant 9.99999996E-13 : f32
    %110 = vector.broadcast %cst_35 : f32 to vector<16x1xf32>
    %111 = arith.addf %109, %110 : vector<16x1xf32>
    %112 = math.rsqrt %111 : vector<16x1xf32>
    %113 = vector.broadcast %112 : vector<16x1xf32> to vector<16x32xf32>
    %114 = arith.mulf %104, %113 : vector<16x32xf32>
    %115 = vector.broadcast %8 : vector<1x32xf32> to vector<16x32xf32>
    %116 = arith.mulf %115, %114 : vector<16x32xf32>
    %117 = vector.broadcast %9 : vector<1x32xf32> to vector<16x32xf32>
    %118 = arith.addf %116, %117 : vector<16x32xf32>
    %c0_36 = arith.constant 0 : index
    %c0_37 = arith.constant 0 : index
    %119 = vector.load %arg5[%c0_36, %c0_37] : memref<16x32xf32, #tpu.memory_space<vmem>>, vector<16x32xf32>
    tpu.vector_store %arg5[%c0_36, %c0_37], %118 {strides = array<i32>} : memref<16x32xf32, #tpu.memory_space<vmem>>, vector<16x32xf32>,
    return
  }
  func.func @transform_0(%arg0: i32) -> (i32, i32) {
    %c0_i32 = arith.constant 0 : i32
    %c0_i32_0 = arith.constant 0 : i32
    %c0_i32_1 = arith.constant 0 : i32
    return %c0_i32, %c0_i32_0 : i32, i32
  }
  func.func @transform_1(%arg0: i32) -> (i32, i32) {
    %c0_i32 = arith.constant 0 : i32
    %c0_i32_0 = arith.constant 0 : i32
    %c0_i32_1 = arith.constant 0 : i32
    return %c0_i32, %c0_i32_0 : i32, i32
  }
  func.func @transform_2(%arg0: i32) -> (i32, i32) {
    %c0_i32 = arith.constant 0 : i32
    %c0_i32_0 = arith.constant 0 : i32
    %c0_i32_1 = arith.constant 0 : i32
    return %c0_i32, %c0_i32_0 : i32, i32
  }
  func.func @transform_3(%arg0: i32) -> (i32, i32) {
    %c0_i32 = arith.constant 0 : i32
    %c0_i32_0 = arith.constant 0 : i32
    %c0_i32_1 = arith.constant 0 : i32
    return %c0_i32, %c0_i32_0 : i32, i32
  }
  func.func @transform_4(%arg0: i32) -> (i32, i32) {
    %c0_i32 = arith.constant 0 : i32
    %c0_i32_0 = arith.constant 0 : i32
    %c0_i32_1 = arith.constant 0 : i32
    return %c0_i32, %c0_i32_0 : i32, i32
  }
}

</mosaic_0001>

<llo_original>
// kernel: tpu_custom_call.1
$region0: #{tpu_custom_call.1}
  #allocation0 [shape = 'u32[]', space=smem, size = 0x4, offset = 0x4, fixed_abs, tag = 'smem constant byte address 0x4 - core index']
  #allocation1 [shape = 'u32[144,128]{1,0:T(1,128)}', space=vmem, size = 0x12000, scoped, tag = 'internal scratch']
  %s0 = inlined_call_operand.hbm [shape: f32[16,32], index: 0, kind: input, shape index: {}]
  %s1 = inlined_call_operand.hbm [shape: f32[16,16], index: 1, kind: input, shape index: {}]
  %s2 = inlined_call_operand.hbm [shape: f32[32,128], index: 2, kind: input, shape index: {}]
  %s3 = inlined_call_operand.vmem [shape: f32[3,128], index: 3, kind: input, shape index: {}]
  %s4 = inlined_call_operand.hbm [shape: f32[16,32], index: 4, kind: output, shape index: {}]
  %s5 = sld [smem:[#allocation0]]
  $region38: #{tpu_custom_call.1} parent=0
    _
  %s7 = ssub.s32 1, %s5
  %s8 = scalar_select 0, %s7, %s5
  $region1: #{tpu_custom_call.1} parent=0
    #allocation2 [shape = 'u8[8192]{0}', space=vmem, size = 0x2000, scoped, tag = 'input window, operand 0, single buffered']
    #allocation3 [shape = 's32[1]{0}', space=sflag, size = 0x4, scoped, tag = 'scoped memory for tpu_custom_call.1']
    #allocation4 [shape = 's32[1]{0}', space=sflag, size = 0x4, scoped, tag = 'scoped memory for tpu_custom_call.1']
    #allocation5 [shape = 'u8[8192]{0}', space=vmem, size = 0x2000, scoped, tag = 'input window, operand 1, single buffered']
    #allocation6 [shape = 's32[1]{0}', space=sflag, size = 0x4, scoped, tag = 'scoped memory for tpu_custom_call.1']
    #allocation7 [shape = 'u8[16384]{0}', space=vmem, size = 0x4000, scoped, tag = 'input window, operand 2, single buffered']
    #allocation8 [shape = 'u8[8192]{0}', space=vmem, size = 0x2000, scoped, tag = 'output window, operand 0, single buffered']
    %9 = vsyncpa [#allocation3], 0
    %10 = vsyncpa [#allocation6], 0
    %11 = vsyncpa [#allocation4], 0
    // Predicated region
    $region2: #{tpu_custom_call.1} parent=1 // pred_check
      _
    $region3: #{tpu_custom_call.1} parent=1 // pred_check_branch
      %13 = sbr.rel (0) target = $region5
    $region4: #{tpu_custom_call.1} parent=1 // pred_region
      %s15 = ssub.s32 256, 256
      %16 = vsyncadd [#allocation3], %s15
      %s17 = sshll.u32 [#allocation2], 4
      %s18 = int_to_ptr.vmem [resolvable:$true] %s17
      %23 = dma.hbm_to_vmem [thread:$0]  %s0, 256, %s18, [#allocation3], 128, 128, 8
    $region5: #{tpu_custom_call.1} parent=1 // pred_fallthru
      _
    // Predicated region
    $region6: #{tpu_custom_call.1} parent=1 // pred_check
      _
    $region7: #{tpu_custom_call.1} parent=1 // pred_check_branch
      %25 = sbr.rel (0) target = $region9
    $region8: #{tpu_custom_call.1} parent=1 // pred_region
      %s27 = ssub.s32 256, 256
      %28 = vsyncadd [#allocation6], %s27
      %s29 = sshll.u32 [#allocation5], 4
      %s30 = int_to_ptr.vmem [resolvable:$true] %s29
      %35 = dma.hbm_to_vmem [thread:$0]  %s1, 256, %s30, [#allocation6], 128, 128, 8
    $region9: #{tpu_custom_call.1} parent=1 // pred_fallthru
      _
    // Predicated region
    $region10: #{tpu_custom_call.1} parent=1 // pred_check
      _
    $region11: #{tpu_custom_call.1} parent=1 // pred_check_branch
      %37 = sbr.rel (0) target = $region13
    $region12: #{tpu_custom_call.1} parent=1 // pred_region
      %s39 = ssub.s32 512, 512
      %40 = vsyncadd [#allocation6], %s39
      %s41 = sshll.u32 [#allocation7], 4
      %s42 = int_to_ptr.vmem [resolvable:$true] %s41
      %47 = dma.hbm_to_vmem [thread:$0]  %s2, 512, %s42, [#allocation6], 128, 128, 8
    $region13: #{tpu_custom_call.1} parent=1 // pred_fallthru
      _
    // Predicated region
    $region14: #{tpu_custom_call.1} parent=1 // pred_check
      _
    $region15: #{tpu_custom_call.1} parent=1 // pred_check_branch
      %49 = sbr.rel (0) target = $region17
    $region16: #{tpu_custom_call.1} parent=1 // pred_region
      _
    $region17: #{tpu_custom_call.1} parent=1 // pred_fallthru
      _
    // Predicated region
    $region18: #{tpu_custom_call.1} parent=1 // pred_check
      _
    $region19: #{tpu_custom_call.1} parent=1 // pred_check_branch
      %51 = sbr.rel (0) target = $region21
    $region20: #{tpu_custom_call.1} parent=1 // pred_region
      %52 = dma.done [#allocation3], 256
    $region21: #{tpu_custom_call.1} parent=1 // pred_fallthru
      _
    // Predicated region
    $region22: #{tpu_custom_call.1} parent=1 // pred_check
      _
    $region23: #{tpu_custom_call.1} parent=1 // pred_check_branch
      %54 = sbr.rel (0) target = $region25
    $region24: #{tpu_custom_call.1} parent=1 // pred_region
      %55 = dma.done [#allocation6], 256
    $region25: #{tpu_custom_call.1} parent=1 // pred_fallthru
      _
    // Predicated region
    $region26: #{tpu_custom_call.1} parent=1 // pred_check
      _
    $region27: #{tpu_custom_call.1} parent=1 // pred_check_branch
      %57 = sbr.rel (0) target = $region29
    $region28: #{tpu_custom_call.1} parent=1 // pred_region
      %58 = dma.done [#allocation6], 512
    $region29: #{tpu_custom_call.1} parent=1 // pred_fallthru
      _
    %v59 = vld [vmem:[#allocation2] sm:$0xff]
    %v60 = vld [vmem:[#allocation2 + $0x8] sm:$0xff]
    %v61 = vld [vmem:[#allocation5] sm:$0xff]
    %v62 = vld [vmem:[#allocation5 + $0x8] sm:$0xff]
    %v63 = vld [vmem:[#allocation7] sm:$0xff]
    %v64 = vld [vmem:[#allocation7 + $0x8] sm:$0xff]
    %v65 = vld [vmem:[#allocation7 + $0x10] sm:$0xff]
    %v66 = vld [vmem:[#allocation7 + $0x18] sm:$0xff]
    %v67 = vld [vmem:[%s3] sm:$0x7]
    %v68 = vlaneseq
    %v69 = vshrl.u32 %v68, 7
    %v70 = vsub.s32 0, %v69
    %v71 = vrot.slane %v67, %v70
    %vm72 = vcmask 261120
    %v74 = vsel %vm72, %v59, 0
    %v77 = vsel %vm72, %v60, 0
    %79 = vmatprep.subr.mxu0 0.0
    %80 = vmatpush1.msra.mxu0 %v63
    %81 = vmatprep.subr.mxu0 0.0
    %82 = vmatpush1.msra.mxu0 %v64
    %83 = vmatprep.subr.mxu0 0.0
    %84 = vmatpush1.msra.mxu0 %v65
    %85 = vmatprep.subr.mxu0 0.0
    %86 = vmatpush1.msra.mxu0 %v66
    %87 = vmatprep.subr.mxu0 0.0
    %88 = vmatpush1.msra.mxu0 0.0
    %89 = vmatprep.subr.mxu0 0.0
    %90 = vmatpush1.msra.mxu0 0.0
    %91 = vmatprep.subr.mxu0 0.0
    %92 = vmatpush1.msra.mxu0 0.0
    %93 = vmatprep.subr.mxu0 0.0
    %94 = vmatpush1.msra.mxu0 0.0
    %95 = vmatprep.subr.mxu0 0.0
    %96 = vmatpush1.msra.mxu0 0.0
    %97 = vmatprep.subr.mxu0 0.0
    %98 = vmatpush1.msra.mxu0 0.0
    %99 = vmatprep.subr.mxu0 0.0
    %100 = vmatpush1.msra.mxu0 0.0
    %101 = vmatprep.subr.mxu0 0.0
    %102 = vmatpush1.msra.mxu0 0.0
    %103 = vmatprep.subr.mxu0 0.0
    %104 = vmatpush1.msra.mxu0 0.0
    %105 = vmatprep.subr.mxu0 0.0
    %106 = vmatpush1.msra.mxu0 0.0
    %107 = vmatprep.subr.mxu0 0.0
    %108 = vmatpush1.msra.mxu0 0.0
    %109 = vmatprep.subr.mxu0 0.0
    %110 = vmatpush1.msra.mxu0 0.0
    %111 = vmatprep.subr.mxu0 0.0
    %112 = vmatpush1.msra.mxu0 0.0
    %113 = vmatprep.subr.mxu0 0.0
    %114 = vmatpush1.msra.mxu0 0.0
    %115 = vmatprep.subr.mxu0 0.0
    %116 = vmatpush1.msra.mxu0 0.0
    %117 = vmatprep.subr.mxu0 0.0
    %118 = vmatpush1.msra.mxu0 0.0
    %119 = vmatprep.subr.mxu0 0.0
    %120 = vmatpush1.msra.mxu0 0.0
    %121 = vmatprep.subr.mxu0 0.0
    %122 = vmatpush1.msra.mxu0 0.0
    %123 = vmatprep.subr.mxu0 0.0
    %124 = vmatpush1.msra.mxu0 0.0
    %125 = vmatprep.subr.mxu0 0.0
    %126 = vmatpush1.msra.mxu0 0.0
    %127 = vmatprep.subr.mxu0 0.0
    %128 = vmatpush1.msra.mxu0 0.0
    %129 = vmatprep.subr.mxu0 0.0
    %130 = vmatpush1.msra.mxu0 0.0
    %131 = vmatprep.subr.mxu0 0.0
    %132 = vmatpush1.msra.mxu0 0.0
    %133 = vmatprep.subr.mxu0 0.0
    %134 = vmatpush1.msra.mxu0 0.0
    %135 = vmatprep.subr.mxu0 0.0
    %136 = vmatpush1.msra.mxu0 0.0
    %137 = vmatprep.subr.mxu0 0.0
    %138 = vmatpush1.msra.mxu0 0.0
    %139 = vmatprep.subr.mxu0 0.0
    %140 = vmatpush1.msra.mxu0 0.0
    %141 = vmatprep.subr.mxu0 0.0
    %142 = vmatpush1.msra.mxu0 0.0
    %143 = vmatprep.mubr.f32.mxu0 0.0
    %144 = vmatmul.mubr.f32.gmra.mrb[0].mxu0 %v74
    %v145 = vpop.f32.mrb[0].mxu0
    %v146 = vadd.f32 %v71, %v145
    %v147 = vpop.f32.mrb[0].mxu0
    %148 = vmatprep.mubr.f32.mxu0 0.0
    %149 = vmatmul.mubr.f32.gmra.mrb[0].mxu0 %v77
    %v150 = vpop.f32.mrb[0].mxu0
    %v151 = vadd.f32 %v71, %v150
    %v152 = vpop.f32.mrb[0].mxu0
    %153 = vdwg.mxu0
    %156 = vrot.lane.b32.xlu0 %v146, 96
    %v157 = vpop.permute.xlu0 %156
    %158 = vrot.lane.b32.xlu0 %v151, 96
    %v159 = vpop.permute.xlu0 %158
    %vm160 = vcmask 64512
    %v161 = vsel %vm160, %v146, 0
    %v163 = vsel %vm160, %v151, 0
    %v165 = vsel %vm160, %v157, 0
    %v167 = vsel %vm160, %v159, 0
    %169 = vmatprep.subr.mxu0 0.0
    %170 = vmatpush1.xpose.msra.mxu0 %v165
    %171 = vmatprep.subr.mxu0 0.0
    %172 = vmatpush1.xpose.msra.mxu0 %v167
    %173 = vmatprep.subr.mxu0 0.0
    %174 = vmatpush1.xpose.msra.mxu0 0.0
    %175 = vmatprep.subr.mxu0 0.0
    %176 = vmatpush1.xpose.msra.mxu0 0.0
    %177 = vmatprep.subr.mxu0 0.0
    %178 = vmatpush1.xpose.msra.mxu0 0.0
    %179 = vmatprep.subr.mxu0 0.0
    %180 = vmatpush1.xpose.msra.mxu0 0.0
    %181 = vmatprep.subr.mxu0 0.0
    %182 = vmatpush1.xpose.msra.mxu0 0.0
    %183 = vmatprep.subr.mxu0 0.0
    %184 = vmatpush1.xpose.msra.mxu0 0.0
    %185 = vmatprep.subr.mxu0 0.0
    %186 = vmatpush1.xpose.msra.mxu0 0.0
    %187 = vmatprep.subr.mxu0 0.0
    %188 = vmatpush1.xpose.msra.mxu0 0.0
    %189 = vmatprep.subr.mxu0 0.0
    %190 = vmatpush1.xpose.msra.mxu0 0.0
    %191 = vmatprep.subr.mxu0 0.0
    %192 = vmatpush1.xpose.msra.mxu0 0.0
    %193 = vmatprep.subr.mxu0 0.0
    %194 = vmatpush1.xpose.msra.mxu0 0.0
    %195 = vmatprep.subr.mxu0 0.0
    %196 = vmatpush1.xpose.msra.mxu0 0.0
    %197 = vmatprep.subr.mxu0 0.0
    %198 = vmatpush1.xpose.msra.mxu0 0.0
    %199 = vmatprep.subr.mxu0 0.0
    %200 = vmatpush1.xpose.msra.mxu0 0.0
    %201 = vmatprep.subr.mxu0 0.0
    %202 = vmatpush1.xpose.msra.mxu0 0.0
    %203 = vmatprep.subr.mxu0 0.0
    %204 = vmatpush1.xpose.msra.mxu0 0.0
    %205 = vmatprep.subr.mxu0 0.0
    %206 = vmatpush1.xpose.msra.mxu0 0.0
    %207 = vmatprep.subr.mxu0 0.0
    %208 = vmatpush1.xpose.msra.mxu0 0.0
    %209 = vmatprep.subr.mxu0 0.0
    %210 = vmatpush1.xpose.msra.mxu0 0.0
    %211 = vmatprep.subr.mxu0 0.0
    %212 = vmatpush1.xpose.msra.mxu0 0.0
    %213 = vmatprep.subr.mxu0 0.0
    %214 = vmatpush1.xpose.msra.mxu0 0.0
    %215 = vmatprep.subr.mxu0 0.0
    %216 = vmatpush1.xpose.msra.mxu0 0.0
    %217 = vmatprep.subr.mxu0 0.0
    %218 = vmatpush1.xpose.msra.mxu0 0.0
    %219 = vmatprep.subr.mxu0 0.0
    %220 = vmatpush1.xpose.msra.mxu0 0.0
    %221 = vmatprep.subr.mxu0 0.0
    %222 = vmatpush1.xpose.msra.mxu0 0.0
    %223 = vmatprep.subr.mxu0 0.0
    %224 = vmatpush1.xpose.msra.mxu0 0.0
    %225 = vmatprep.subr.mxu0 0.0
    %226 = vmatpush1.xpose.msra.mxu0 0.0
    %227 = vmatprep.subr.mxu0 0.0
    %228 = vmatpush1.xpose.msra.mxu0 0.0
    %229 = vmatprep.subr.mxu0 0.0
    %230 = vmatpush1.xpose.msra.mxu0 0.0
    %231 = vmatprep.subr.mxu0 0.0
    %232 = vmatpush1.xpose.msra.mxu0 0.0
    %233 = vmatprep.mubr.f32.mxu0 0.0
    %234 = vmatmul.mubr.f32.gmra.mrb[0].mxu0 %v161
    %v235 = vpop.f32.mrb[0].mxu0
    %v236 = vadd.f32 0.0, %v235
    %v237 = vpop.f32.mrb[0].mxu0
    %238 = vmatprep.mubr.f32.mxu0 0.0
    %239 = vmatmul.mubr.f32.gmra.mrb[0].mxu0 %v163
    %v240 = vpop.f32.mrb[0].mxu0
    %v241 = vadd.f32 0.0, %v240
    %v242 = vpop.f32.mrb[0].mxu0
    %243 = vdwg.mxu0
    %v244 = vmul.f32 %v236, 0.35355338
    %v245 = vmul.f32 %v241, 0.35355338
    %v246 = vadd.f32 %v244, %v61
    %v247 = vadd.f32 %v245, %v62
    %vm248 = vcmask 130048
    %v249 = vsel %vm248, %v246, -inf
    %250 = vmax.xlane.f32.xlu0 %v249
    %v251 = vpop.xlane.xlu0 %250
    %v252 = vsel %vm248, %v247, -inf
    %253 = vmax.xlane.f32.xlu0 %v252
    %v254 = vpop.xlane.xlu0 %253
    %v255 = vsub.f32 %v246, %v251
    %v256 = vsub.f32 %v247, %v254
    %v257 = vmul.f32 %v255, 1.442695
    %v258 = vpow.pop %v257
    %v259 = vmul.f32 %v256, 1.442695
    %v260 = vpow.pop %v259
    %v261 = vsel %vm248, %v258, 0.0
    %262 = vadd.xlane.f32.xlu0 %v261
    %v263 = vpop.xlane.xlu0 %262
    %v264 = vsel %vm248, %v260, 0.0
    %265 = vadd.xlane.f32.xlu0 %v264
    %v266 = vpop.xlane.xlu0 %265
    %v267 = vrcp.pop %v263
    %v268 = vrcp.pop %v266
    %v269 = vmul.f32 %v258, %v267
    %v270 = vmul.f32 %v260, %v268
    %271 = vrot.lane.b32.xlu0 %v146, 64
    %v272 = vpop.permute.xlu0 %271
    %273 = vrot.lane.b32.xlu0 %v151, 64
    %v274 = vpop.permute.xlu0 %273
    %v278 = vsel %vm248, %v269, 0
    %v281 = vsel %vm248, %v270, 0
    %283 = vmatprep.subr.mxu0 0.0
    %284 = vmatpush1.msra.mxu0 %v272
    %285 = vmatprep.subr.mxu0 0.0
    %286 = vmatpush1.msra.mxu0 %v274
    %287 = vmatprep.subr.mxu0 0.0
    %288 = vmatpush1.msra.mxu0 0.0
    %289 = vmatprep.subr.mxu0 0.0
    %290 = vmatpush1.msra.mxu0 0.0
    %291 = vmatprep.subr.mxu0 0.0
    %292 = vmatpush1.msra.mxu0 0.0
    %293 = vmatprep.subr.mxu0 0.0
    %294 = vmatpush1.msra.mxu0 0.0
    %295 = vmatprep.subr.mxu0 0.0
    %296 = vmatpush1.msra.mxu0 0.0
    %297 = vmatprep.subr.mxu0 0.0
    %298 = vmatpush1.msra.mxu0 0.0
    %299 = vmatprep.subr.mxu0 0.0
    %300 = vmatpush1.msra.mxu0 0.0
    %301 = vmatprep.subr.mxu0 0.0
    %302 = vmatpush1.msra.mxu0 0.0
    %303 = vmatprep.subr.mxu0 0.0
    %304 = vmatpush1.msra.mxu0 0.0
    %305 = vmatprep.subr.mxu0 0.0
    %306 = vmatpush1.msra.mxu0 0.0
    %307 = vmatprep.subr.mxu0 0.0
    %308 = vmatpush1.msra.mxu0 0.0
    %309 = vmatprep.subr.mxu0 0.0
    %310 = vmatpush1.msra.mxu0 0.0
    %311 = vmatprep.subr.mxu0 0.0
    %312 = vmatpush1.msra.mxu0 0.0
    %313 = vmatprep.subr.mxu0 0.0
    %314 = vmatpush1.msra.mxu0 0.0
    %315 = vmatprep.subr.mxu0 0.0
    %316 = vmatpush1.msra.mxu0 0.0
    %317 = vmatprep.subr.mxu0 0.0
    %318 = vmatpush1.msra.mxu0 0.0
    %319 = vmatprep.subr.mxu0 0.0
    %320 = vmatpush1.msra.mxu0 0.0
    %321 = vmatprep.subr.mxu0 0.0
    %322 = vmatpush1.msra.mxu0 0.0
    %323 = vmatprep.subr.mxu0 0.0
    %324 = vmatpush1.msra.mxu0 0.0
    %325 = vmatprep.subr.mxu0 0.0
    %326 = vmatpush1.msra.mxu0 0.0
    %327 = vmatprep.subr.mxu0 0.0
    %328 = vmatpush1.msra.mxu0 0.0
    %329 = vmatprep.subr.mxu0 0.0
    %330 = vmatpush1.msra.mxu0 0.0
    %331 = vmatprep.subr.mxu0 0.0
    %332 = vmatpush1.msra.mxu0 0.0
    %333 = vmatprep.subr.mxu0 0.0
    %334 = vmatpush1.msra.mxu0 0.0
    %335 = vmatprep.subr.mxu0 0.0
    %336 = vmatpush1.msra.mxu0 0.0
    %337 = vmatprep.subr.mxu0 0.0
    %338 = vmatpush1.msra.mxu0 0.0
    %339 = vmatprep.subr.mxu0 0.0
    %340 = vmatpush1.msra.mxu0 0.0
    %341 = vmatprep.subr.mxu0 0.0
    %342 = vmatpush1.msra.mxu0 0.0
    %343 = vmatprep.subr.mxu0 0.0
    %344 = vmatpush1.msra.mxu0 0.0
    %345 = vmatprep.subr.mxu0 0.0
    %346 = vmatpush1.msra.mxu0 0.0
    %347 = vmatprep.mubr.f32.mxu0 0.0
    %348 = vmatmul.mubr.f32.gmra.mrb[0].mxu0 %v278
    %v349 = vpop.f32.mrb[0].mxu0
    %v350 = vadd.f32 0.0, %v349
    %v351 = vpop.f32.mrb[0].mxu0
    %352 = vmatprep.mubr.f32.mxu0 0.0
    %353 = vmatmul.mubr.f32.gmra.mrb[0].mxu0 %v281
    %v354 = vpop.f32.mrb[0].mxu0
    %v355 = vadd.f32 0.0, %v354
    %v356 = vpop.f32.mrb[0].mxu0
    %357 = vdwg.mxu0
    %358 = vrot.lane.b32.xlu0 %v146, 120
    %v359 = vpop.permute.xlu0 %358
    %360 = vrot.lane.b32.xlu0 %v151, 120
    %v361 = vpop.permute.xlu0 %360
    %362 = vrot.lane.b32.xlu0 %v146, 88
    %v363 = vpop.permute.xlu0 %362
    %364 = vrot.lane.b32.xlu0 %v151, 88
    %v365 = vpop.permute.xlu0 %364
    %v366 = vsel %vm160, %v359, 0
    %v368 = vsel %vm160, %v361, 0
    %v370 = vsel %vm160, %v363, 0
    %v372 = vsel %vm160, %v365, 0
    %374 = vmatprep.subr.mxu0 0.0
    %375 = vmatpush1.xpose.msra.mxu0 %v370
    %376 = vmatprep.subr.mxu0 0.0
    %377 = vmatpush1.xpose.msra.mxu0 %v372
    %378 = vmatprep.subr.mxu0 0.0
    %379 = vmatpush1.xpose.msra.mxu0 0.0
    %380 = vmatprep.subr.mxu0 0.0
    %381 = vmatpush1.xpose.msra.mxu0 0.0
    %382 = vmatprep.subr.mxu0 0.0
    %383 = vmatpush1.xpose.msra.mxu0 0.0
    %384 = vmatprep.subr.mxu0 0.0
    %385 = vmatpush1.xpose.msra.mxu0 0.0
    %386 = vmatprep.subr.mxu0 0.0
    %387 = vmatpush1.xpose.msra.mxu0 0.0
    %388 = vmatprep.subr.mxu0 0.0
    %389 = vmatpush1.xpose.msra.mxu0 0.0
    %390 = vmatprep.subr.mxu0 0.0
    %391 = vmatpush1.xpose.msra.mxu0 0.0
    %392 = vmatprep.subr.mxu0 0.0
    %393 = vmatpush1.xpose.msra.mxu0 0.0
    %394 = vmatprep.subr.mxu0 0.0
    %395 = vmatpush1.xpose.msra.mxu0 0.0
    %396 = vmatprep.subr.mxu0 0.0
    %397 = vmatpush1.xpose.msra.mxu0 0.0
    %398 = vmatprep.subr.mxu0 0.0
    %399 = vmatpush1.xpose.msra.mxu0 0.0
    %400 = vmatprep.subr.mxu0 0.0
    %401 = vmatpush1.xpose.msra.mxu0 0.0
    %402 = vmatprep.subr.mxu0 0.0
    %403 = vmatpush1.xpose.msra.mxu0 0.0
    %404 = vmatprep.subr.mxu0 0.0
    %405 = vmatpush1.xpose.msra.mxu0 0.0
    %406 = vmatprep.subr.mxu0 0.0
    %407 = vmatpush1.xpose.msra.mxu0 0.0
    %408 = vmatprep.subr.mxu0 0.0
    %409 = vmatpush1.xpose.msra.mxu0 0.0
    %410 = vmatprep.subr.mxu0 0.0
    %411 = vmatpush1.xpose.msra.mxu0 0.0
    %412 = vmatprep.subr.mxu0 0.0
    %413 = vmatpush1.xpose.msra.mxu0 0.0
    %414 = vmatprep.subr.mxu0 0.0
    %415 = vmatpush1.xpose.msra.mxu0 0.0
    %416 = vmatprep.subr.mxu0 0.0
    %417 = vmatpush1.xpose.msra.mxu0 0.0
    %418 = vmatprep.subr.mxu0 0.0
    %419 = vmatpush1.xpose.msra.mxu0 0.0
    %420 = vmatprep.subr.mxu0 0.0
    %421 = vmatpush1.xpose.msra.mxu0 0.0
    %422 = vmatprep.subr.mxu0 0.0
    %423 = vmatpush1.xpose.msra.mxu0 0.0
    %424 = vmatprep.subr.mxu0 0.0
    %425 = vmatpush1.xpose.msra.mxu0 0.0
    %426 = vmatprep.subr.mxu0 0.0
    %427 = vmatpush1.xpose.msra.mxu0 0.0
    %428 = vmatprep.subr.mxu0 0.0
    %429 = vmatpush1.xpose.msra.mxu0 0.0
    %430 = vmatprep.subr.mxu0 0.0
    %431 = vmatpush1.xpose.msra.mxu0 0.0
    %432 = vmatprep.subr.mxu0 0.0
    %433 = vmatpush1.xpose.msra.mxu0 0.0
    %434 = vmatprep.subr.mxu0 0.0
    %435 = vmatpush1.xpose.msra.mxu0 0.0
    %436 = vmatprep.subr.mxu0 0.0
    %437 = vmatpush1.xpose.msra.mxu0 0.0
    %438 = vmatprep.mubr.f32.mxu0 0.0
    %439 = vmatmul.mubr.f32.gmra.mrb[0].mxu0 %v366
    %v440 = vpop.f32.mrb[0].mxu0
    %v441 = vadd.f32 0.0, %v440
    %v442 = vpop.f32.mrb[0].mxu0
    %443 = vmatprep.mubr.f32.mxu0 0.0
    %444 = vmatmul.mubr.f32.gmra.mrb[0].mxu0 %v368
    %v445 = vpop.f32.mrb[0].mxu0
    %v446 = vadd.f32 0.0, %v445
    %v447 = vpop.f32.mrb[0].mxu0
    %448 = vdwg.mxu0
    %v449 = vmul.f32 %v441, 0.35355338
    %v450 = vmul.f32 %v446, 0.35355338
    %v451 = vadd.f32 %v449, %v61
    %v452 = vadd.f32 %v450, %v62
    %v453 = vsel %vm248, %v451, -inf
    %454 = vmax.xlane.f32.xlu0 %v453
    %v455 = vpop.xlane.xlu0 %454
    %v456 = vsel %vm248, %v452, -inf
    %457 = vmax.xlane.f32.xlu0 %v456
    %v458 = vpop.xlane.xlu0 %457
    %v459 = vsub.f32 %v451, %v455
    %v460 = vsub.f32 %v452, %v458
    %v461 = vmul.f32 %v459, 1.442695
    %v462 = vpow.pop %v461
    %v463 = vmul.f32 %v460, 1.442695
    %v464 = vpow.pop %v463
    %v465 = vsel %vm248, %v462, 0.0
    %466 = vadd.xlane.f32.xlu0 %v465
    %v467 = vpop.xlane.xlu0 %466
    %v468 = vsel %vm248, %v464, 0.0
    %469 = vadd.xlane.f32.xlu0 %v468
    %v470 = vpop.xlane.xlu0 %469
    %v471 = vrcp.pop %v467
    %v472 = vrcp.pop %v470
    %v473 = vmul.f32 %v462, %v471
    %v474 = vmul.f32 %v464, %v472
    %475 = vrot.lane.b32.xlu0 %v146, 56
    %v476 = vpop.permute.xlu0 %475
    %477 = vrot.lane.b32.xlu0 %v151, 56
    %v478 = vpop.permute.xlu0 %477
    %v482 = vsel %vm248, %v473, 0
    %v485 = vsel %vm248, %v474, 0
    %487 = vmatprep.subr.mxu0 0.0
    %488 = vmatpush1.msra.mxu0 %v476
    %489 = vmatprep.subr.mxu0 0.0
    %490 = vmatpush1.msra.mxu0 %v478
    %491 = vmatprep.subr.mxu0 0.0
    %492 = vmatpush1.msra.mxu0 0.0
    %493 = vmatprep.subr.mxu0 0.0
    %494 = vmatpush1.msra.mxu0 0.0
    %495 = vmatprep.subr.mxu0 0.0
    %496 = vmatpush1.msra.mxu0 0.0
    %497 = vmatprep.subr.mxu0 0.0
    %498 = vmatpush1.msra.mxu0 0.0
    %499 = vmatprep.subr.mxu0 0.0
    %500 = vmatpush1.msra.mxu0 0.0
    %501 = vmatprep.subr.mxu0 0.0
    %502 = vmatpush1.msra.mxu0 0.0
    %503 = vmatprep.subr.mxu0 0.0
    %504 = vmatpush1.msra.mxu0 0.0
    %505 = vmatprep.subr.mxu0 0.0
    %506 = vmatpush1.msra.mxu0 0.0
    %507 = vmatprep.subr.mxu0 0.0
    %508 = vmatpush1.msra.mxu0 0.0
    %509 = vmatprep.subr.mxu0 0.0
    %510 = vmatpush1.msra.mxu0 0.0
    %511 = vmatprep.subr.mxu0 0.0
    %512 = vmatpush1.msra.mxu0 0.0
    %513 = vmatprep.subr.mxu0 0.0
    %514 = vmatpush1.msra.mxu0 0.0
    %515 = vmatprep.subr.mxu0 0.0
    %516 = vmatpush1.msra.mxu0 0.0
    %517 = vmatprep.subr.mxu0 0.0
    %518 = vmatpush1.msra.mxu0 0.0
    %519 = vmatprep.subr.mxu0 0.0
    %520 = vmatpush1.msra.mxu0 0.0
    %521 = vmatprep.subr.mxu0 0.0
    %522 = vmatpush1.msra.mxu0 0.0
    %523 = vmatprep.subr.mxu0 0.0
    %524 = vmatpush1.msra.mxu0 0.0
    %525 = vmatprep.subr.mxu0 0.0
    %526 = vmatpush1.msra.mxu0 0.0
    %527 = vmatprep.subr.mxu0 0.0
    %528 = vmatpush1.msra.mxu0 0.0
    %529 = vmatprep.subr.mxu0 0.0
    %530 = vmatpush1.msra.mxu0 0.0
    %531 = vmatprep.subr.mxu0 0.0
    %532 = vmatpush1.msra.mxu0 0.0
    %533 = vmatprep.subr.mxu0 0.0
    %534 = vmatpush1.msra.mxu0 0.0
    %535 = vmatprep.subr.mxu0 0.0
    %536 = vmatpush1.msra.mxu0 0.0
    %537 = vmatprep.subr.mxu0 0.0
    %538 = vmatpush1.msra.mxu0 0.0
    %539 = vmatprep.subr.mxu0 0.0
    %540 = vmatpush1.msra.mxu0 0.0
    %541 = vmatprep.subr.mxu0 0.0
    %542 = vmatpush1.msra.mxu0 0.0
    %543 = vmatprep.subr.mxu0 0.0
    %544 = vmatpush1.msra.mxu0 0.0
    %545 = vmatprep.subr.mxu0 0.0
    %546 = vmatpush1.msra.mxu0 0.0
    %547 = vmatprep.subr.mxu0 0.0
    %548 = vmatpush1.msra.mxu0 0.0
    %549 = vmatprep.subr.mxu0 0.0
    %550 = vmatpush1.msra.mxu0 0.0
    %551 = vmatprep.mubr.f32.mxu0 0.0
    %552 = vmatmul.mubr.f32.gmra.mrb[0].mxu0 %v482
    %v553 = vpop.f32.mrb[0].mxu0
    %v554 = vadd.f32 0.0, %v553
    %v555 = vpop.f32.mrb[0].mxu0
    %556 = vmatprep.mubr.f32.mxu0 0.0
    %557 = vmatmul.mubr.f32.gmra.mrb[0].mxu0 %v485
    %v558 = vpop.f32.mrb[0].mxu0
    %v559 = vadd.f32 0.0, %v558
    %v560 = vpop.f32.mrb[0].mxu0
    %561 = vdwg.mxu0
    %563 = vrot.lane.b32.xlu0 %v64, 32
    %v564 = vpop.permute.xlu0 %563
    %v567 = vsel %vm160, %v554, 0
    %v570 = vsel %vm160, %v559, 0
    %572 = vmatprep.subr.mxu0 0.0
    %573 = vmatpush1.msra.mxu0 %v564
    %574 = vmatprep.subr.mxu0 0.0
    %575 = vmatpush1.msra.mxu0 0.0
    %576 = vmatprep.subr.mxu0 0.0
    %577 = vmatpush1.msra.mxu0 0.0
    %578 = vmatprep.subr.mxu0 0.0
    %579 = vmatpush1.msra.mxu0 0.0
    %580 = vmatprep.subr.mxu0 0.0
    %581 = vmatpush1.msra.mxu0 0.0
    %582 = vmatprep.subr.mxu0 0.0
    %583 = vmatpush1.msra.mxu0 0.0
    %584 = vmatprep.subr.mxu0 0.0
    %585 = vmatpush1.msra.mxu0 0.0
    %586 = vmatprep.subr.mxu0 0.0
    %587 = vmatpush1.msra.mxu0 0.0
    %588 = vmatprep.subr.mxu0 0.0
    %589 = vmatpush1.msra.mxu0 0.0
    %590 = vmatprep.subr.mxu0 0.0
    %591 = vmatpush1.msra.mxu0 0.0
    %592 = vmatprep.subr.mxu0 0.0
    %593 = vmatpush1.msra.mxu0 0.0
    %594 = vmatprep.subr.mxu0 0.0
    %595 = vmatpush1.msra.mxu0 0.0
    %596 = vmatprep.subr.mxu0 0.0
    %597 = vmatpush1.msra.mxu0 0.0
    %598 = vmatprep.subr.mxu0 0.0
    %599 = vmatpush1.msra.mxu0 0.0
    %600 = vmatprep.subr.mxu0 0.0
    %601 = vmatpush1.msra.mxu0 0.0
    %602 = vmatprep.subr.mxu0 0.0
    %603 = vmatpush1.msra.mxu0 0.0
    %604 = vmatprep.subr.mxu0 0.0
    %605 = vmatpush1.msra.mxu0 0.0
    %606 = vmatprep.subr.mxu0 0.0
    %607 = vmatpush1.msra.mxu0 0.0
    %608 = vmatprep.subr.mxu0 0.0
    %609 = vmatpush1.msra.mxu0 0.0
    %610 = vmatprep.subr.mxu0 0.0
    %611 = vmatpush1.msra.mxu0 0.0
    %612 = vmatprep.subr.mxu0 0.0
    %613 = vmatpush1.msra.mxu0 0.0
    %614 = vmatprep.subr.mxu0 0.0
    %615 = vmatpush1.msra.mxu0 0.0
    %616 = vmatprep.subr.mxu0 0.0
    %617 = vmatpush1.msra.mxu0 0.0
    %618 = vmatprep.subr.mxu0 0.0
    %619 = vmatpush1.msra.mxu0 0.0
    %620 = vmatprep.subr.mxu0 0.0
    %621 = vmatpush1.msra.mxu0 0.0
    %622 = vmatprep.subr.mxu0 0.0
    %623 = vmatpush1.msra.mxu0 0.0
    %624 = vmatprep.subr.mxu0 0.0
    %625 = vmatpush1.msra.mxu0 0.0
    %626 = vmatprep.subr.mxu0 0.0
    %627 = vmatpush1.msra.mxu0 0.0
    %628 = vmatprep.subr.mxu0 0.0
    %629 = vmatpush1.msra.mxu0 0.0
    %630 = vmatprep.subr.mxu0 0.0
    %631 = vmatpush1.msra.mxu0 0.0
    %632 = vmatprep.subr.mxu0 0.0
    %633 = vmatpush1.msra.mxu0 0.0
    %634 = vmatprep.subr.mxu0 0.0
    %635 = vmatpush1.msra.mxu0 0.0
    %636 = vmatprep.mubr.f32.mxu0 0.0
    %637 = vmatmul.mubr.f32.gmra.mrb[0].mxu0 %v567
    %v638 = vpop.f32.mrb[0].mxu0
    %v639 = vadd.f32 0.0, %v638
    %v640 = vpop.f32.mrb[0].mxu0
    %641 = vmatprep.mubr.f32.mxu0 0.0
    %642 = vmatmul.mubr.f32.gmra.mrb[0].mxu0 %v570
    %v643 = vpop.f32.mrb[0].mxu0
    %v644 = vadd.f32 0.0, %v643
    %v645 = vpop.f32.mrb[0].mxu0
    %646 = vdwg.mxu0
    %648 = vrot.lane.b32.xlu0 %v63, 32
    %v649 = vpop.permute.xlu0 %648
    %v652 = vsel %vm160, %v350, 0
    %v655 = vsel %vm160, %v355, 0
    %657 = vmatprep.subr.mxu0 0.0
    %658 = vmatpush1.msra.mxu0 %v649
    %659 = vmatprep.subr.mxu0 0.0
    %660 = vmatpush1.msra.mxu0 0.0
    %661 = vmatprep.subr.mxu0 0.0
    %662 = vmatpush1.msra.mxu0 0.0
    %663 = vmatprep.subr.mxu0 0.0
    %664 = vmatpush1.msra.mxu0 0.0
    %665 = vmatprep.subr.mxu0 0.0
    %666 = vmatpush1.msra.mxu0 0.0
    %667 = vmatprep.subr.mxu0 0.0
    %668 = vmatpush1.msra.mxu0 0.0
    %669 = vmatprep.subr.mxu0 0.0
    %670 = vmatpush1.msra.mxu0 0.0
    %671 = vmatprep.subr.mxu0 0.0
    %672 = vmatpush1.msra.mxu0 0.0
    %673 = vmatprep.subr.mxu0 0.0
    %674 = vmatpush1.msra.mxu0 0.0
    %675 = vmatprep.subr.mxu0 0.0
    %676 = vmatpush1.msra.mxu0 0.0
    %677 = vmatprep.subr.mxu0 0.0
    %678 = vmatpush1.msra.mxu0 0.0
    %679 = vmatprep.subr.mxu0 0.0
    %680 = vmatpush1.msra.mxu0 0.0
    %681 = vmatprep.subr.mxu0 0.0
    %682 = vmatpush1.msra.mxu0 0.0
    %683 = vmatprep.subr.mxu0 0.0
    %684 = vmatpush1.msra.mxu0 0.0
    %685 = vmatprep.subr.mxu0 0.0
    %686 = vmatpush1.msra.mxu0 0.0
    %687 = vmatprep.subr.mxu0 0.0
    %688 = vmatpush1.msra.mxu0 0.0
    %689 = vmatprep.subr.mxu0 0.0
    %690 = vmatpush1.msra.mxu0 0.0
    %691 = vmatprep.subr.mxu0 0.0
    %692 = vmatpush1.msra.mxu0 0.0
    %693 = vmatprep.subr.mxu0 0.0
    %694 = vmatpush1.msra.mxu0 0.0
    %695 = vmatprep.subr.mxu0 0.0
    %696 = vmatpush1.msra.mxu0 0.0
    %697 = vmatprep.subr.mxu0 0.0
    %698 = vmatpush1.msra.mxu0 0.0
    %699 = vmatprep.subr.mxu0 0.0
    %700 = vmatpush1.msra.mxu0 0.0
    %701 = vmatprep.subr.mxu0 0.0
    %702 = vmatpush1.msra.mxu0 0.0
    %703 = vmatprep.subr.mxu0 0.0
    %704 = vmatpush1.msra.mxu0 0.0
    %705 = vmatprep.subr.mxu0 0.0
    %706 = vmatpush1.msra.mxu0 0.0
    %707 = vmatprep.subr.mxu0 0.0
    %708 = vmatpush1.msra.mxu0 0.0
    %709 = vmatprep.subr.mxu0 0.0
    %710 = vmatpush1.msra.mxu0 0.0
    %711 = vmatprep.subr.mxu0 0.0
    %712 = vmatpush1.msra.mxu0 0.0
    %713 = vmatprep.subr.mxu0 0.0
    %714 = vmatpush1.msra.mxu0 0.0
    %715 = vmatprep.subr.mxu0 0.0
    %716 = vmatpush1.msra.mxu0 0.0
    %717 = vmatprep.subr.mxu0 0.0
    %718 = vmatpush1.msra.mxu0 0.0
    %719 = vmatprep.subr.mxu0 0.0
    %720 = vmatpush1.msra.mxu0 0.0
    %721 = vmatprep.mubr.f32.mxu0 0.0
    %722 = vmatmul.mubr.f32.gmra.mrb[0].mxu0 %v652
    %v723 = vpop.f32.mrb[0].mxu0
    %v724 = vadd.f32 %v639, %v723
    %v725 = vpop.f32.mrb[0].mxu0
    %726 = vmatprep.mubr.f32.mxu0 0.0
    %727 = vmatmul.mubr.f32.gmra.mrb[0].mxu0 %v655
    %v728 = vpop.f32.mrb[0].mxu0
    %v729 = vadd.f32 %v644, %v728
    %v730 = vpop.f32.mrb[0].mxu0
    %731 = vdwg.mxu0
    %732 = vrot.lane.b32.xlu0 %v146, 112
    %v733 = vpop.permute.xlu0 %732
    %734 = vrot.lane.b32.xlu0 %v151, 112
    %v735 = vpop.permute.xlu0 %734
    %736 = vrot.lane.b32.xlu0 %v146, 80
    %v737 = vpop.permute.xlu0 %736
    %738 = vrot.lane.b32.xlu0 %v151, 80
    %v739 = vpop.permute.xlu0 %738
    %v740 = vsel %vm160, %v733, 0
    %v742 = vsel %vm160, %v735, 0
    %v744 = vsel %vm160, %v737, 0
    %v746 = vsel %vm160, %v739, 0
    %748 = vmatprep.subr.mxu0 0.0
    %749 = vmatpush1.xpose.msra.mxu0 %v744
    %750 = vmatprep.subr.mxu0 0.0
    %751 = vmatpush1.xpose.msra.mxu0 %v746
    %752 = vmatprep.subr.mxu0 0.0
    %753 = vmatpush1.xpose.msra.mxu0 0.0
    %754 = vmatprep.subr.mxu0 0.0
    %755 = vmatpush1.xpose.msra.mxu0 0.0
    %756 = vmatprep.subr.mxu0 0.0
    %757 = vmatpush1.xpose.msra.mxu0 0.0
    %758 = vmatprep.subr.mxu0 0.0
    %759 = vmatpush1.xpose.msra.mxu0 0.0
    %760 = vmatprep.subr.mxu0 0.0
    %761 = vmatpush1.xpose.msra.mxu0 0.0
    %762 = vmatprep.subr.mxu0 0.0
    %763 = vmatpush1.xpose.msra.mxu0 0.0
    %764 = vmatprep.subr.mxu0 0.0
    %765 = vmatpush1.xpose.msra.mxu0 0.0
    %766 = vmatprep.subr.mxu0 0.0
    %767 = vmatpush1.xpose.msra.mxu0 0.0
    %768 = vmatprep.subr.mxu0 0.0
    %769 = vmatpush1.xpose.msra.mxu0 0.0
    %770 = vmatprep.subr.mxu0 0.0
    %771 = vmatpush1.xpose.msra.mxu0 0.0
    %772 = vmatprep.subr.mxu0 0.0
    %773 = vmatpush1.xpose.msra.mxu0 0.0
    %774 = vmatprep.subr.mxu0 0.0
    %775 = vmatpush1.xpose.msra.mxu0 0.0
    %776 = vmatprep.subr.mxu0 0.0
    %777 = vmatpush1.xpose.msra.mxu0 0.0
    %778 = vmatprep.subr.mxu0 0.0
    %779 = vmatpush1.xpose.msra.mxu0 0.0
    %780 = vmatprep.subr.mxu0 0.0
    %781 = vmatpush1.xpose.msra.mxu0 0.0
    %782 = vmatprep.subr.mxu0 0.0
    %783 = vmatpush1.xpose.msra.mxu0 0.0
    %784 = vmatprep.subr.mxu0 0.0
    %785 = vmatpush1.xpose.msra.mxu0 0.0
    %786 = vmatprep.subr.mxu0 0.0
    %787 = vmatpush1.xpose.msra.mxu0 0.0
    %788 = vmatprep.subr.mxu0 0.0
    %789 = vmatpush1.xpose.msra.mxu0 0.0
    %790 = vmatprep.subr.mxu0 0.0
    %791 = vmatpush1.xpose.msra.mxu0 0.0
    %792 = vmatprep.subr.mxu0 0.0
    %793 = vmatpush1.xpose.msra.mxu0 0.0
    %794 = vmatprep.subr.mxu0 0.0
    %795 = vmatpush1.xpose.msra.mxu0 0.0
    %796 = vmatprep.subr.mxu0 0.0
    %797 = vmatpush1.xpose.msra.mxu0 0.0
    %798 = vmatprep.subr.mxu0 0.0
    %799 = vmatpush1.xpose.msra.mxu0 0.0
    %800 = vmatprep.subr.mxu0 0.0
    %801 = vmatpush1.xpose.msra.mxu0 0.0
    %802 = vmatprep.subr.mxu0 0.0
    %803 = vmatpush1.xpose.msra.mxu0 0.0
    %804 = vmatprep.subr.mxu0 0.0
    %805 = vmatpush1.xpose.msra.mxu0 0.0
    %806 = vmatprep.subr.mxu0 0.0
    %807 = vmatpush1.xpose.msra.mxu0 0.0
    %808 = vmatprep.subr.mxu0 0.0
    %809 = vmatpush1.xpose.msra.mxu0 0.0
    %810 = vmatprep.subr.mxu0 0.0
    %811 = vmatpush1.xpose.msra.mxu0 0.0
    %812 = vmatprep.mubr.f32.mxu0 0.0
    %813 = vmatmul.mubr.f32.gmra.mrb[0].mxu0 %v740
    %v814 = vpop.f32.mrb[0].mxu0
    %v815 = vadd.f32 0.0, %v814
    %v816 = vpop.f32.mrb[0].mxu0
    %817 = vmatprep.mubr.f32.mxu0 0.0
    %818 = vmatmul.mubr.f32.gmra.mrb[0].mxu0 %v742
    %v819 = vpop.f32.mrb[0].mxu0
    %v820 = vadd.f32 0.0, %v819
    %v821 = vpop.f32.mrb[0].mxu0
    %822 = vdwg.mxu0
    %v823 = vmul.f32 %v815, 0.35355338
    %v824 = vmul.f32 %v820, 0.35355338
    %v825 = vadd.f32 %v823, %v61
    %v826 = vadd.f32 %v824, %v62
    %v827 = vsel %vm248, %v825, -inf
    %828 = vmax.xlane.f32.xlu0 %v827
    %v829 = vpop.xlane.xlu0 %828
    %v830 = vsel %vm248, %v826, -inf
    %831 = vmax.xlane.f32.xlu0 %v830
    %v832 = vpop.xlane.xlu0 %831
    %v833 = vsub.f32 %v825, %v829
    %v834 = vsub.f32 %v826, %v832
    %v835 = vmul.f32 %v833, 1.442695
    %v836 = vpow.pop %v835
    %v837 = vmul.f32 %v834, 1.442695
    %v838 = vpow.pop %v837
    %v839 = vsel %vm248, %v836, 0.0
    %840 = vadd.xlane.f32.xlu0 %v839
    %v841 = vpop.xlane.xlu0 %840
    %v842 = vsel %vm248, %v838, 0.0
    %843 = vadd.xlane.f32.xlu0 %v842
    %v844 = vpop.xlane.xlu0 %843
    %v845 = vrcp.pop %v841
    %v846 = vrcp.pop %v844
    %v847 = vmul.f32 %v836, %v845
    %v848 = vmul.f32 %v838, %v846
    %849 = vrot.lane.b32.xlu0 %v146, 48
    %v850 = vpop.permute.xlu0 %849
    %851 = vrot.lane.b32.xlu0 %v151, 48
    %v852 = vpop.permute.xlu0 %851
    %v856 = vsel %vm248, %v847, 0
    %v859 = vsel %vm248, %v848, 0
    %861 = vmatprep.subr.mxu0 0.0
    %862 = vmatpush1.msra.mxu0 %v850
    %863 = vmatprep.subr.mxu0 0.0
    %864 = vmatpush1.msra.mxu0 %v852
    %865 = vmatprep.subr.mxu0 0.0
    %866 = vmatpush1.msra.mxu0 0.0
    %867 = vmatprep.subr.mxu0 0.0
    %868 = vmatpush1.msra.mxu0 0.0
    %869 = vmatprep.subr.mxu0 0.0
    %870 = vmatpush1.msra.mxu0 0.0
    %871 = vmatprep.subr.mxu0 0.0
    %872 = vmatpush1.msra.mxu0 0.0
    %873 = vmatprep.subr.mxu0 0.0
    %874 = vmatpush1.msra.mxu0 0.0
    %875 = vmatprep.subr.mxu0 0.0
    %876 = vmatpush1.msra.mxu0 0.0
    %877 = vmatprep.subr.mxu0 0.0
    %878 = vmatpush1.msra.mxu0 0.0
    %879 = vmatprep.subr.mxu0 0.0
    %880 = vmatpush1.msra.mxu0 0.0
    %881 = vmatprep.subr.mxu0 0.0
    %882 = vmatpush1.msra.mxu0 0.0
    %883 = vmatprep.subr.mxu0 0.0
    %884 = vmatpush1.msra.mxu0 0.0
    %885 = vmatprep.subr.mxu0 0.0
    %886 = vmatpush1.msra.mxu0 0.0
    %887 = vmatprep.subr.mxu0 0.0
    %888 = vmatpush1.msra.mxu0 0.0
    %889 = vmatprep.subr.mxu0 0.0
    %890 = vmatpush1.msra.mxu0 0.0
    %891 = vmatprep.subr.mxu0 0.0
    %892 = vmatpush1.msra.mxu0 0.0
    %893 = vmatprep.subr.mxu0 0.0
    %894 = vmatpush1.msra.mxu0 0.0
    %895 = vmatprep.subr.mxu0 0.0
    %896 = vmatpush1.msra.mxu0 0.0
    %897 = vmatprep.subr.mxu0 0.0
    %898 = vmatpush1.msra.mxu0 0.0
    %899 = vmatprep.subr.mxu0 0.0
    %900 = vmatpush1.msra.mxu0 0.0
    %901 = vmatprep.subr.mxu0 0.0
    %902 = vmatpush1.msra.mxu0 0.0
    %903 = vmatprep.subr.mxu0 0.0
    %904 = vmatpush1.msra.mxu0 0.0
    %905 = vmatprep.subr.mxu0 0.0
    %906 = vmatpush1.msra.mxu0 0.0
    %907 = vmatprep.subr.mxu0 0.0
    %908 = vmatpush1.msra.mxu0 0.0
    %909 = vmatprep.subr.mxu0 0.0
    %910 = vmatpush1.msra.mxu0 0.0
    %911 = vmatprep.subr.mxu0 0.0
    %912 = vmatpush1.msra.mxu0 0.0
    %913 = vmatprep.subr.mxu0 0.0
    %914 = vmatpush1.msra.mxu0 0.0
    %915 = vmatprep.subr.mxu0 0.0
    %916 = vmatpush1.msra.mxu0 0.0
    %917 = vmatprep.subr.mxu0 0.0
    %918 = vmatpush1.msra.mxu0 0.0
    %919 = vmatprep.subr.mxu0 0.0
    %920 = vmatpush1.msra.mxu0 0.0
    %921 = vmatprep.subr.mxu0 0.0
    %922 = vmatpush1.msra.mxu0 0.0
    %923 = vmatprep.subr.mxu0 0.0
    %924 = vmatpush1.msra.mxu0 0.0
    %925 = vmatprep.mubr.f32.mxu0 0.0
    %926 = vmatmul.mubr.f32.gmra.mrb[0].mxu0 %v856
    %v927 = vpop.f32.mrb[0].mxu0
    %v928 = vadd.f32 0.0, %v927
    %v929 = vpop.f32.mrb[0].mxu0
    %930 = vmatprep.mubr.f32.mxu0 0.0
    %931 = vmatmul.mubr.f32.gmra.mrb[0].mxu0 %v859
    %v932 = vpop.f32.mrb[0].mxu0
    %v933 = vadd.f32 0.0, %v932
    %v934 = vpop.f32.mrb[0].mxu0
    %935 = vdwg.mxu0
    %937 = vrot.lane.b32.xlu0 %v65, 32
    %v938 = vpop.permute.xlu0 %937
    %v941 = vsel %vm160, %v928, 0
    %v944 = vsel %vm160, %v933, 0
    %946 = vmatprep.subr.mxu0 0.0
    %947 = vmatpush1.msra.mxu0 %v938
    %948 = vmatprep.subr.mxu0 0.0
    %949 = vmatpush1.msra.mxu0 0.0
    %950 = vmatprep.subr.mxu0 0.0
    %951 = vmatpush1.msra.mxu0 0.0
    %952 = vmatprep.subr.mxu0 0.0
    %953 = vmatpush1.msra.mxu0 0.0
    %954 = vmatprep.subr.mxu0 0.0
    %955 = vmatpush1.msra.mxu0 0.0
    %956 = vmatprep.subr.mxu0 0.0
    %957 = vmatpush1.msra.mxu0 0.0
    %958 = vmatprep.subr.mxu0 0.0
    %959 = vmatpush1.msra.mxu0 0.0
    %960 = vmatprep.subr.mxu0 0.0
    %961 = vmatpush1.msra.mxu0 0.0
    %962 = vmatprep.subr.mxu0 0.0
    %963 = vmatpush1.msra.mxu0 0.0
    %964 = vmatprep.subr.mxu0 0.0
    %965 = vmatpush1.msra.mxu0 0.0
    %966 = vmatprep.subr.mxu0 0.0
    %967 = vmatpush1.msra.mxu0 0.0
    %968 = vmatprep.subr.mxu0 0.0
    %969 = vmatpush1.msra.mxu0 0.0
    %970 = vmatprep.subr.mxu0 0.0
    %971 = vmatpush1.msra.mxu0 0.0
    %972 = vmatprep.subr.mxu0 0.0
    %973 = vmatpush1.msra.mxu0 0.0
    %974 = vmatprep.subr.mxu0 0.0
    %975 = vmatpush1.msra.mxu0 0.0
    %976 = vmatprep.subr.mxu0 0.0
    %977 = vmatpush1.msra.mxu0 0.0
    %978 = vmatprep.subr.mxu0 0.0
    %979 = vmatpush1.msra.mxu0 0.0
    %980 = vmatprep.subr.mxu0 0.0
    %981 = vmatpush1.msra.mxu0 0.0
    %982 = vmatprep.subr.mxu0 0.0
    %983 = vmatpush1.msra.mxu0 0.0
    %984 = vmatprep.subr.mxu0 0.0
    %985 = vmatpush1.msra.mxu0 0.0
    %986 = vmatprep.subr.mxu0 0.0
    %987 = vmatpush1.msra.mxu0 0.0
    %988 = vmatprep.subr.mxu0 0.0
    %989 = vmatpush1.msra.mxu0 0.0
    %990 = vmatprep.subr.mxu0 0.0
    %991 = vmatpush1.msra.mxu0 0.0
    %992 = vmatprep.subr.mxu0 0.0
    %993 = vmatpush1.msra.mxu0 0.0
    %994 = vmatprep.subr.mxu0 0.0
    %995 = vmatpush1.msra.mxu0 0.0
    %996 = vmatprep.subr.mxu0 0.0
    %997 = vmatpush1.msra.mxu0 0.0
    %998 = vmatprep.subr.mxu0 0.0
    %999 = vmatpush1.msra.mxu0 0.0
    %1000 = vmatprep.subr.mxu0 0.0
    %1001 = vmatpush1.msra.mxu0 0.0
    %1002 = vmatprep.subr.mxu0 0.0
    %1003 = vmatpush1.msra.mxu0 0.0
    %1004 = vmatprep.subr.mxu0 0.0
    %1005 = vmatpush1.msra.mxu0 0.0
    %1006 = vmatprep.subr.mxu0 0.0
    %1007 = vmatpush1.msra.mxu0 0.0
    %1008 = vmatprep.subr.mxu0 0.0
    %1009 = vmatpush1.msra.mxu0 0.0
    %1010 = vmatprep.mubr.f32.mxu0 0.0
    %1011 = vmatmul.mubr.f32.gmra.mrb[0].mxu0 %v941
    %v1012 = vpop.f32.mrb[0].mxu0
    %v1013 = vadd.f32 0.0, %v1012
    %v1014 = vpop.f32.mrb[0].mxu0
    %1015 = vmatprep.mubr.f32.mxu0 0.0
    %1016 = vmatmul.mubr.f32.gmra.mrb[0].mxu0 %v944
    %v1017 = vpop.f32.mrb[0].mxu0
    %v1018 = vadd.f32 0.0, %v1017
    %v1019 = vpop.f32.mrb[0].mxu0
    %1020 = vdwg.mxu0
    %v1021 = vadd.f32 %v724, %v1013
    %v1022 = vadd.f32 %v729, %v1018
    %1023 = vrot.lane.b32.xlu0 %v146, 104
    %v1024 = vpop.permute.xlu0 %1023
    %1025 = vrot.lane.b32.xlu0 %v151, 104
    %v1026 = vpop.permute.xlu0 %1025
    %1027 = vrot.lane.b32.xlu0 %v146, 72
    %v1028 = vpop.permute.xlu0 %1027
    %1029 = vrot.lane.b32.xlu0 %v151, 72
    %v1030 = vpop.permute.xlu0 %1029
    %v1031 = vsel %vm160, %v1024, 0
    %v1033 = vsel %vm160, %v1026, 0
    %v1035 = vsel %vm160, %v1028, 0
    %v1037 = vsel %vm160, %v1030, 0
    %1039 = vmatprep.subr.mxu0 0.0
    %1040 = vmatpush1.xpose.msra.mxu0 %v1035
    %1041 = vmatprep.subr.mxu0 0.0
    %1042 = vmatpush1.xpose.msra.mxu0 %v1037
    %1043 = vmatprep.subr.mxu0 0.0
    %1044 = vmatpush1.xpose.msra.mxu0 0.0
    %1045 = vmatprep.subr.mxu0 0.0
    %1046 = vmatpush1.xpose.msra.mxu0 0.0
    %1047 = vmatprep.subr.mxu0 0.0
    %1048 = vmatpush1.xpose.msra.mxu0 0.0
    %1049 = vmatprep.subr.mxu0 0.0
    %1050 = vmatpush1.xpose.msra.mxu0 0.0
    %1051 = vmatprep.subr.mxu0 0.0
    %1052 = vmatpush1.xpose.msra.mxu0 0.0
    %1053 = vmatprep.subr.mxu0 0.0
    %1054 = vmatpush1.xpose.msra.mxu0 0.0
    %1055 = vmatprep.subr.mxu0 0.0
    %1056 = vmatpush1.xpose.msra.mxu0 0.0
    %1057 = vmatprep.subr.mxu0 0.0
    %1058 = vmatpush1.xpose.msra.mxu0 0.0
    %1059 = vmatprep.subr.mxu0 0.0
    %1060 = vmatpush1.xpose.msra.mxu0 0.0
    %1061 = vmatprep.subr.mxu0 0.0
    %1062 = vmatpush1.xpose.msra.mxu0 0.0
    %1063 = vmatprep.subr.mxu0 0.0
    %1064 = vmatpush1.xpose.msra.mxu0 0.0
    %1065 = vmatprep.subr.mxu0 0.0
    %1066 = vmatpush1.xpose.msra.mxu0 0.0
    %1067 = vmatprep.subr.mxu0 0.0
    %1068 = vmatpush1.xpose.msra.mxu0 0.0
    %1069 = vmatprep.subr.mxu0 0.0
    %1070 = vmatpush1.xpose.msra.mxu0 0.0
    %1071 = vmatprep.subr.mxu0 0.0
    %1072 = vmatpush1.xpose.msra.mxu0 0.0
    %1073 = vmatprep.subr.mxu0 0.0
    %1074 = vmatpush1.xpose.msra.mxu0 0.0
    %1075 = vmatprep.subr.mxu0 0.0
    %1076 = vmatpush1.xpose.msra.mxu0 0.0
    %1077 = vmatprep.subr.mxu0 0.0
    %1078 = vmatpush1.xpose.msra.mxu0 0.0
    %1079 = vmatprep.subr.mxu0 0.0
    %1080 = vmatpush1.xpose.msra.mxu0 0.0
    %1081 = vmatprep.subr.mxu0 0.0
    %1082 = vmatpush1.xpose.msra.mxu0 0.0
    %1083 = vmatprep.subr.mxu0 0.0
    %1084 = vmatpush1.xpose.msra.mxu0 0.0
    %1085 = vmatprep.subr.mxu0 0.0
    %1086 = vmatpush1.xpose.msra.mxu0 0.0
    %1087 = vmatprep.subr.mxu0 0.0
    %1088 = vmatpush1.xpose.msra.mxu0 0.0
    %1089 = vmatprep.subr.mxu0 0.0
    %1090 = vmatpush1.xpose.msra.mxu0 0.0
    %1091 = vmatprep.subr.mxu0 0.0
    %1092 = vmatpush1.xpose.msra.mxu0 0.0
    %1093 = vmatprep.subr.mxu0 0.0
    %1094 = vmatpush1.xpose.msra.mxu0 0.0
    %1095 = vmatprep.subr.mxu0 0.0
    %1096 = vmatpush1.xpose.msra.mxu0 0.0
    %1097 = vmatprep.subr.mxu0 0.0
    %1098 = vmatpush1.xpose.msra.mxu0 0.0
    %1099 = vmatprep.subr.mxu0 0.0
    %1100 = vmatpush1.xpose.msra.mxu0 0.0
    %1101 = vmatprep.subr.mxu0 0.0
    %1102 = vmatpush1.xpose.msra.mxu0 0.0
    %1103 = vmatprep.mubr.f32.mxu0 0.0
    %1104 = vmatmul.mubr.f32.gmra.mrb[0].mxu0 %v1031
    %v1105 = vpop.f32.mrb[0].mxu0
    %v1106 = vadd.f32 0.0, %v1105
    %v1107 = vpop.f32.mrb[0].mxu0
    %1108 = vmatprep.mubr.f32.mxu0 0.0
    %1109 = vmatmul.mubr.f32.gmra.mrb[0].mxu0 %v1033
    %v1110 = vpop.f32.mrb[0].mxu0
    %v1111 = vadd.f32 0.0, %v1110
    %v1112 = vpop.f32.mrb[0].mxu0
    %1113 = vdwg.mxu0
    %v1114 = vmul.f32 %v1106, 0.35355338
    %v1115 = vmul.f32 %v1111, 0.35355338
    %v1116 = vadd.f32 %v1114, %v61
    %v1117 = vadd.f32 %v1115, %v62
    %v1118 = vsel %vm248, %v1116, -inf
    %1119 = vmax.xlane.f32.xlu0 %v1118
    %v1120 = vpop.xlane.xlu0 %1119
    %v1121 = vsel %vm248, %v1117, -inf
    %1122 = vmax.xlane.f32.xlu0 %v1121
    %v1123 = vpop.xlane.xlu0 %1122
    %v1124 = vsub.f32 %v1116, %v1120
    %v1125 = vsub.f32 %v1117, %v1123
    %v1126 = vmul.f32 %v1124, 1.442695
    %v1127 = vpow.pop %v1126
    %v1128 = vmul.f32 %v1125, 1.442695
    %v1129 = vpow.pop %v1128
    %v1130 = vsel %vm248, %v1127, 0.0
    %1131 = vadd.xlane.f32.xlu0 %v1130
    %v1132 = vpop.xlane.xlu0 %1131
    %v1133 = vsel %vm248, %v1129, 0.0
    %1134 = vadd.xlane.f32.xlu0 %v1133
    %v1135 = vpop.xlane.xlu0 %1134
    %v1136 = vrcp.pop %v1132
    %v1137 = vrcp.pop %v1135
    %v1138 = vmul.f32 %v1127, %v1136
    %v1139 = vmul.f32 %v1129, %v1137
    %1140 = vrot.lane.b32.xlu0 %v146, 40
    %v1141 = vpop.permute.xlu0 %1140
    %1142 = vrot.lane.b32.xlu0 %v151, 40
    %v1143 = vpop.permute.xlu0 %1142
    %v1147 = vsel %vm248, %v1138, 0
    %v1150 = vsel %vm248, %v1139, 0
    %1152 = vmatprep.subr.mxu0 0.0
    %1153 = vmatpush1.msra.mxu0 %v1141
    %1154 = vmatprep.subr.mxu0 0.0
    %1155 = vmatpush1.msra.mxu0 %v1143
    %1156 = vmatprep.subr.mxu0 0.0
    %1157 = vmatpush1.msra.mxu0 0.0
    %1158 = vmatprep.subr.mxu0 0.0
    %1159 = vmatpush1.msra.mxu0 0.0
    %1160 = vmatprep.subr.mxu0 0.0
    %1161 = vmatpush1.msra.mxu0 0.0
    %1162 = vmatprep.subr.mxu0 0.0
    %1163 = vmatpush1.msra.mxu0 0.0
    %1164 = vmatprep.subr.mxu0 0.0
    %1165 = vmatpush1.msra.mxu0 0.0
    %1166 = vmatprep.subr.mxu0 0.0
    %1167 = vmatpush1.msra.mxu0 0.0
    %1168 = vmatprep.subr.mxu0 0.0
    %1169 = vmatpush1.msra.mxu0 0.0
    %1170 = vmatprep.subr.mxu0 0.0
    %1171 = vmatpush1.msra.mxu0 0.0
    %1172 = vmatprep.subr.mxu0 0.0
    %1173 = vmatpush1.msra.mxu0 0.0
    %1174 = vmatprep.subr.mxu0 0.0
    %1175 = vmatpush1.msra.mxu0 0.0
    %1176 = vmatprep.subr.mxu0 0.0
    %1177 = vmatpush1.msra.mxu0 0.0
    %1178 = vmatprep.subr.mxu0 0.0
    %1179 = vmatpush1.msra.mxu0 0.0
    %1180 = vmatprep.subr.mxu0 0.0
    %1181 = vmatpush1.msra.mxu0 0.0
    %1182 = vmatprep.subr.mxu0 0.0
    %1183 = vmatpush1.msra.mxu0 0.0
    %1184 = vmatprep.subr.mxu0 0.0
    %1185 = vmatpush1.msra.mxu0 0.0
    %1186 = vmatprep.subr.mxu0 0.0
    %1187 = vmatpush1.msra.mxu0 0.0
    %1188 = vmatprep.subr.mxu0 0.0
    %1189 = vmatpush1.msra.mxu0 0.0
    %1190 = vmatprep.subr.mxu0 0.0
    %1191 = vmatpush1.msra.mxu0 0.0
    %1192 = vmatprep.subr.mxu0 0.0
    %1193 = vmatpush1.msra.mxu0 0.0
    %1194 = vmatprep.subr.mxu0 0.0
    %1195 = vmatpush1.msra.mxu0 0.0
    %1196 = vmatprep.subr.mxu0 0.0
    %1197 = vmatpush1.msra.mxu0 0.0
    %1198 = vmatprep.subr.mxu0 0.0
    %1199 = vmatpush1.msra.mxu0 0.0
    %1200 = vmatprep.subr.mxu0 0.0
    %1201 = vmatpush1.msra.mxu0 0.0
    %1202 = vmatprep.subr.mxu0 0.0
    %1203 = vmatpush1.msra.mxu0 0.0
    %1204 = vmatprep.subr.mxu0 0.0
    %1205 = vmatpush1.msra.mxu0 0.0
    %1206 = vmatprep.subr.mxu0 0.0
    %1207 = vmatpush1.msra.mxu0 0.0
    %1208 = vmatprep.subr.mxu0 0.0
    %1209 = vmatpush1.msra.mxu0 0.0
    %1210 = vmatprep.subr.mxu0 0.0
    %1211 = vmatpush1.msra.mxu0 0.0
    %1212 = vmatprep.subr.mxu0 0.0
    %1213 = vmatpush1.msra.mxu0 0.0
    %1214 = vmatprep.subr.mxu0 0.0
    %1215 = vmatpush1.msra.mxu0 0.0
    %1216 = vmatprep.mubr.f32.mxu0 0.0
    %1217 = vmatmul.mubr.f32.gmra.mrb[0].mxu0 %v1147
    %v1218 = vpop.f32.mrb[0].mxu0
    %v1219 = vadd.f32 0.0, %v1218
    %v1220 = vpop.f32.mrb[0].mxu0
    %1221 = vmatprep.mubr.f32.mxu0 0.0
    %1222 = vmatmul.mubr.f32.gmra.mrb[0].mxu0 %v1150
    %v1223 = vpop.f32.mrb[0].mxu0
    %v1224 = vadd.f32 0.0, %v1223
    %v1225 = vpop.f32.mrb[0].mxu0
    %1226 = vdwg.mxu0
    %1228 = vrot.lane.b32.xlu0 %v66, 32
    %v1229 = vpop.permute.xlu0 %1228
    %v1232 = vsel %vm160, %v1219, 0
    %v1235 = vsel %vm160, %v1224, 0
    %1237 = vmatprep.subr.mxu0 0.0
    %1238 = vmatpush1.msra.mxu0 %v1229
    %1239 = vmatprep.subr.mxu0 0.0
    %1240 = vmatpush1.msra.mxu0 0.0
    %1241 = vmatprep.subr.mxu0 0.0
    %1242 = vmatpush1.msra.mxu0 0.0
    %1243 = vmatprep.subr.mxu0 0.0
    %1244 = vmatpush1.msra.mxu0 0.0
    %1245 = vmatprep.subr.mxu0 0.0
    %1246 = vmatpush1.msra.mxu0 0.0
    %1247 = vmatprep.subr.mxu0 0.0
    %1248 = vmatpush1.msra.mxu0 0.0
    %1249 = vmatprep.subr.mxu0 0.0
    %1250 = vmatpush1.msra.mxu0 0.0
    %1251 = vmatprep.subr.mxu0 0.0
    %1252 = vmatpush1.msra.mxu0 0.0
    %1253 = vmatprep.subr.mxu0 0.0
    %1254 = vmatpush1.msra.mxu0 0.0
    %1255 = vmatprep.subr.mxu0 0.0
    %1256 = vmatpush1.msra.mxu0 0.0
    %1257 = vmatprep.subr.mxu0 0.0
    %1258 = vmatpush1.msra.mxu0 0.0
    %1259 = vmatprep.subr.mxu0 0.0
    %1260 = vmatpush1.msra.mxu0 0.0
    %1261 = vmatprep.subr.mxu0 0.0
    %1262 = vmatpush1.msra.mxu0 0.0
    %1263 = vmatprep.subr.mxu0 0.0
    %1264 = vmatpush1.msra.mxu0 0.0
    %1265 = vmatprep.subr.mxu0 0.0
    %1266 = vmatpush1.msra.mxu0 0.0
    %1267 = vmatprep.subr.mxu0 0.0
    %1268 = vmatpush1.msra.mxu0 0.0
    %1269 = vmatprep.subr.mxu0 0.0
    %1270 = vmatpush1.msra.mxu0 0.0
    %1271 = vmatprep.subr.mxu0 0.0
    %1272 = vmatpush1.msra.mxu0 0.0
    %1273 = vmatprep.subr.mxu0 0.0
    %1274 = vmatpush1.msra.mxu0 0.0
    %1275 = vmatprep.subr.mxu0 0.0
    %1276 = vmatpush1.msra.mxu0 0.0
    %1277 = vmatprep.subr.mxu0 0.0
    %1278 = vmatpush1.msra.mxu0 0.0
    %1279 = vmatprep.subr.mxu0 0.0
    %1280 = vmatpush1.msra.mxu0 0.0
    %1281 = vmatprep.subr.mxu0 0.0
    %1282 = vmatpush1.msra.mxu0 0.0
    %1283 = vmatprep.subr.mxu0 0.0
    %1284 = vmatpush1.msra.mxu0 0.0
    %1285 = vmatprep.subr.mxu0 0.0
    %1286 = vmatpush1.msra.mxu0 0.0
    %1287 = vmatprep.subr.mxu0 0.0
    %1288 = vmatpush1.msra.mxu0 0.0
    %1289 = vmatprep.subr.mxu0 0.0
    %1290 = vmatpush1.msra.mxu0 0.0
    %1291 = vmatprep.subr.mxu0 0.0
    %1292 = vmatpush1.msra.mxu0 0.0
    %1293 = vmatprep.subr.mxu0 0.0
    %1294 = vmatpush1.msra.mxu0 0.0
    %1295 = vmatprep.subr.mxu0 0.0
    %1296 = vmatpush1.msra.mxu0 0.0
    %1297 = vmatprep.subr.mxu0 0.0
    %1298 = vmatpush1.msra.mxu0 0.0
    %1299 = vmatprep.subr.mxu0 0.0
    %1300 = vmatpush1.msra.mxu0 0.0
    %1301 = vmatprep.mubr.f32.mxu0 0.0
    %1302 = vmatmul.mubr.f32.gmra.mrb[0].mxu0 %v1232
    %v1303 = vpop.f32.mrb[0].mxu0
    %v1304 = vadd.f32 0.0, %v1303
    %v1305 = vpop.f32.mrb[0].mxu0
    %1306 = vmatprep.mubr.f32.mxu0 0.0
    %1307 = vmatmul.mubr.f32.gmra.mrb[0].mxu0 %v1235
    %v1308 = vpop.f32.mrb[0].mxu0
    %v1309 = vadd.f32 0.0, %v1308
    %v1310 = vpop.f32.mrb[0].mxu0
    %1311 = vdwg.mxu0
    %v1312 = vadd.f32 %v1021, %v1304
    %v1313 = vadd.f32 %v1022, %v1309
    %1315 = vrot.lane.b32.xlu0 %v71, 32
    %v1316 = vpop.permute.xlu0 %1315
    %v1318 = vadd.f32 %v1312, %v1316
    %v1319 = vadd.f32 %v1313, %v1316
    %v1320 = vadd.f32 %v1318, %v59
    %v1321 = vadd.f32 %v1319, %v60
    %v1322 = vsel %vm72, %v1320, 0.0
    %1323 = vadd.xlane.f32.xlu0 %v1322
    %v1324 = vpop.xlane.xlu0 %1323
    %v1325 = vsel %vm72, %v1321, 0.0
    %1326 = vadd.xlane.f32.xlu0 %v1325
    %v1327 = vpop.xlane.xlu0 %1326
    %v1328 = vrcp.pop 32.0
    %v1329 = vmul.f32 %v1324, %v1328
    %v1330 = vmul.f32 %v1327, %v1328
    %v1331 = vsub.f32 %v1320, %v1329
    %v1332 = vsub.f32 %v1321, %v1330
    %v1333 = vmul.f32 %v1331, %v1331
    %v1334 = vmul.f32 %v1332, %v1332
    %v1335 = vsel %vm72, %v1333, 0.0
    %1336 = vadd.xlane.f32.xlu0 %v1335
    %v1337 = vpop.xlane.xlu0 %1336
    %v1338 = vsel %vm72, %v1334, 0.0
    %1339 = vadd.xlane.f32.xlu0 %v1338
    %v1340 = vpop.xlane.xlu0 %1339
    %v1341 = vmul.f32 %v1337, %v1328
    %v1342 = vmul.f32 %v1340, %v1328
    %v1343 = vadd.f32 %v1341, 1e-12
    %v1344 = vadd.f32 %v1342, 1e-12
    %v1345 = vrsqrt.pop %v1343
    %v1346 = vrsqrt.pop %v1344
    %v1347 = vmul.f32 %v1331, %v1345
    %v1348 = vmul.f32 %v1332, %v1346
    %v1349 = vlaneseq
    %v1350 = vshrl.u32 %v1349, 7
    %v1351 = vsub.s32 1, %v1350
    %v1352 = vrot.slane %v67, %v1351
    %v1353 = vmul.f32 %v1352, %v1347
    %v1354 = vmul.f32 %v1352, %v1348
    %v1355 = vlaneseq
    %v1356 = vshrl.u32 %v1355, 7
    %v1357 = vsub.s32 2, %v1356
    %v1358 = vrot.slane %v67, %v1357
    %v1359 = vadd.f32 %v1353, %v1358
    %v1360 = vadd.f32 %v1354, %v1358
    %1361 = vst.msk [vmem:[#allocation8] sm:$0xff] %vm72, %v1359
    %1362 = vst.msk [vmem:[#allocation8 + $0x8] sm:$0xff] %vm72, %v1360
    // Predicated region
    $region30: #{tpu_custom_call.1} parent=1 // pred_check
      _
    $region31: #{tpu_custom_call.1} parent=1 // pred_check_branch
      %1364 = sbr.rel (0) target = $region33
    $region32: #{tpu_custom_call.1} parent=1 // pred_region
      %s1366 = ssub.s32 256, 256
      %1367 = vsyncadd [#allocation4], %s1366
      %s1368 = sshll.u32 [#allocation8], 4
      %s1369 = int_to_ptr.vmem [resolvable:$true] %s1368
      %1374 = dma.vmem_to_hbm [thread:$0]  %s1369, 256, %s4, [#allocation4], 128, 128, 8
    $region33: #{tpu_custom_call.1} parent=1 // pred_fallthru
      _
    // Predicated region
    $region34: #{tpu_custom_call.1} parent=1 // pred_check
      _
    $region35: #{tpu_custom_call.1} parent=1 // pred_check_branch
      %1376 = sbr.rel (0) target = $region37
    $region36: #{tpu_custom_call.1} parent=1 // pred_region
      %1377 = dma.done [#allocation4], 256
    $region37: #{tpu_custom_call.1} parent=1 // pred_fallthru
      _
    %1378 = vsyncpa [#allocation3], 1
    %1379 = vsyncpa [#allocation6], 1
    %1380 = vsyncpa [#allocation4], 1

</llo_original>
